<compile_context>
chip_gen: v5e
topology: v5e:2x2
jax: 0.10.0
libtpu: 0.0.40
codegen_flags: <defaults>
</compile_context>

<pallas_src>
import functools
import math
from typing import NamedTuple

import numpy as np
import jax
import jax.numpy as jnp
from jax.experimental import pallas as pl
from jax.experimental.pallas import tpu as pltpu


# ---------------- static per-layer geometry ----------------

class _LayerPlan(NamedTuple):
    cin: int
    cout: int
    kh: int
    kw: int
    up_h: int        # zero-insertion factor along H (conv-transpose stride), 1 for conv
    up_w: int
    pad_top: int     # padding of the equivalent stride-1 conv
    pad_left: int
    h_in: int        # incoming activation rows
    w_in: int        # incoming activation width
    ho: int          # conv output rows
    wo: int          # conv output width
    tanh: bool
    pool: bool       # fused MaxPool2d((1,2), stride=2) after the activation
    contrib: tuple   # per output row: tuple of (input_row, kernel_row_i) pairs


def _build_plan(h_in, w_in):
    """Static geometry of the fused forward pass (enc1's kernel-H folded into Cin)."""
    # (kind, cin, cout, (kh,kw), stride, padding, output_padding, tanh, pool)
    torch_layers = [
        # Conv2d(1, 8, (4,15), padding=(0,7)): kernel-H == H, pad-H == 0 -> H folded
        # into the channel contraction => Cin = 4, kh = 1.
        ("conv",  h_in, 8, (1, 15), (1, 1), (0, 7), (0, 0), True,  True),
        ("conv",  8,    4, (3, 3),  (1, 1), (1, 1), (0, 0), True,  True),
        ("convT", 4,    8, (3, 3),  (2, 2), (1, 1), (0, 1), True,  False),
        ("convT", 8,    8, (3, 3),  (2, 2), (0, 1), (1, 1), True,  False),
        ("convT", 8,    1, (3, 3),  (1, 1), (1, 1), (0, 0), False, False),
    ]
    h, w = 1, w_in
    plan = []
    for kind, cin, cout, (kh, kw), (sh, sw), (ph, pw), (oph, opw), tanh, pool in torch_layers:
        if kind == "conv":
            uh = uw = 1
            pt, pb, pleft, pr = ph, ph, pw, pw
        else:   # conv-transpose == zero-insert + asymmetric pad + stride-1 conv
            uh, uw = sh, sw
            pt, pleft = kh - 1 - ph, kw - 1 - pw
            pb, pr = pt + oph, pleft + opw
        hd = (h - 1) * uh + 1
        wd = (w - 1) * uw + 1
        hp, wp = hd + pt + pb, wd + pleft + pr
        ho, wo = hp - kh + 1, wp - kw + 1
        # For output row `o`, input row `hi` contributes through kernel row
        # i = pad_top + up_h*hi - o  (if 0 <= i < kh).  Rows with no contribution
        # (pure output_padding) get bias only.
        contrib = tuple(
            tuple((hi, pt + uh * hi - o)
                  for hi in range(h) if 0 <= pt + uh * hi - o < kh)
            for o in range(ho))
        plan.append(_LayerPlan(cin, cout, kh, kw, uh, uw, pt, pleft,
                               h, w, ho, wo, tanh, pool, contrib))
        if pool:   # MaxPool2d((1,2), stride=2), PyTorch floor semantics
            h = (ho - 1) // 2 + 1
            w = (wo - 2) // 2 + 1
        else:
            h, w = ho, wo
    return plan, (h, w)


# ---------------- the fused forward kernel ----------------

def _fused_forward_kernel(plan, x_ref, *refs):
    # Split the flat operand list into per-layer refs + the output ref.
    layer_refs, idx = [], 0
    for lyr in plan:
        n = 4 if lyr.pool else 2          # (taps, bias [, pool_even, pool_odd])
        layer_refs.append(refs[idx:idx + n])
        idx += n
    out_ref = refs[idx]

    b_tile = x_ref.shape[1]
    # Activations: python list over H of (B, C*W) f32 tiles (batch on sublanes,
    # C*W flattened on lanes; lane index = c*W + w).
    rows = [x_ref[0].astype(jnp.float32)]

    for lyr, lrefs in zip(plan, layer_refs):
        t_ref, b_ref = lrefs[0], lrefs[1]
        new_rows = []
        for ho in range(lyr.ho):
            acc = None
            for (hi, ki) in lyr.contrib[ho]:
                # One MXU matmul folds channel contraction, kernel-W taps, padding and
                # stride-2 zero insertion (host-precomputed Toeplitz matrix).
                part = jnp.dot(rows[hi], t_ref[ki],
                               preferred_element_type=jnp.float32)
                acc = part if acc is None else acc + part
            if acc is None:               # pure output_padding row: bias only
                acc = jnp.zeros((b_tile, lyr.cout * lyr.wo), jnp.float32)
            acc = acc + b_ref[...]        # (1, Cout*Wo) broadcast over the batch rows
            if lyr.tanh:
                acc = jnp.tanh(acc)
            new_rows.append(acc)

        if lyr.pool:                      # MaxPool2d((1,2), stride=2): exact 0/1 selectors
            se, so = lrefs[2][...], lrefs[3][...]
            new_rows = [
                jnp.maximum(jnp.dot(r, se, preferred_element_type=jnp.float32),
                            jnp.dot(r, so, preferred_element_type=jnp.float32))
                for r in new_rows[0::2]   # H: kernel 1, stride 2
            ]
        rows = new_rows

    # Lane-dense output slab: (B, Ho * Cout*Wo), rows packed along lanes.
    lane = rows[0].shape[-1]
    for ho, r in enumerate(rows):
        out_ref[0, :, ho * lane:(ho + 1) * lane] = r.astype(out_ref.dtype)


# ---------------- public wrapper ----------------

def _choose_b_tile(n, w):
    target = max(1, -(-128 // w))     # fill the 128 lanes: B_TILE * W >= 128
    if n >= 2 * target:
        return target                 # lane-dense tiles AND >= 2 grid steps
    if n >= 2:
        return -(-n // 2)             # keep 2 grid steps so both v7x TCs get work
    return 1


def conv_autoencoder_forward(kparams, x, *, b_tile=None):
    """Fused ConvAutoEncoder forward.  x: (N, 1, 4, W) float32 NCHW, W % 4 == 0."""
    n, cin, h, w = x.shape
    if cin != 1 or h != 4:
        raise ValueError("fused kernel is specialised to 1-channel, height-4 input "
                         "(Conv2d(1, 8, (4,15)) collapses H to 1)")
    if w % 4 != 0 or w < 8:
        raise ValueError("W must be a multiple of 4 (two MaxPool((1,2), 2) stages)")

    plan, (h_out, w_out) = _build_plan(h, w)
    cout_last = plan[-1].cout
    for lyr, ops in zip(plan, kparams):
        if tuple(ops[0].shape) != (lyr.kh, lyr.cin * lyr.w_in, lyr.cout * lyr.wo):
            raise ValueError("kparams were prepared for a different input shape; "
                             f"re-run prepare_params(params, h={h}, w={w})")

    if b_tile is None:
        b_tile = _choose_b_tile(n, w)
    nblk = pl.cdiv(n, b_tile)
    n_pad = nblk * b_tile

    # Host-side layout plumbing: lane index = h*W + w (matches enc1's folded-H taps).
    xk = x.astype(jnp.float32).reshape(n, h * w)
    if n_pad != n:
        xk = jnp.concatenate([xk, jnp.zeros((n_pad - n, h * w), jnp.float32)], axis=0)
    xk = xk.reshape(nblk, b_tile, h * w)

    inputs = [xk]
    in_specs = [pl.BlockSpec((1, b_tile, h * w), lambda i: (i, 0, 0))]
    for ops in kparams:                   # weights VMEM-resident for every grid step
        for arr in ops:
            inputs.append(arr)
            in_specs.append(pl.BlockSpec(arr.shape, lambda i, _nd=arr.ndim: (0,) * _nd))

    out_lane = h_out * cout_last * w_out
    out = pl.pallas_call(
        functools.partial(_fused_forward_kernel, plan),
        grid=(nblk,),                                    # one batch tile per grid step
        in_specs=in_specs,
        out_specs=pl.BlockSpec((1, b_tile, out_lane), lambda i: (i, 0, 0)),
        out_shape=jax.ShapeDtypeStruct((nblk, b_tile, out_lane), jnp.float32),
        compiler_params=pltpu.CompilerParams(
            dimension_semantics=("parallel",)),          # shard batch tiles across cores
    )(*inputs)

    out = out.reshape(n_pad, h_out, cout_last, w_out)[:n]
    return jnp.transpose(out, (0, 2, 1, 3))              # -> (N, C=1, H, W) NCHW


# ---------------- parameters ----------------

def init_params(key):
    """PyTorch-default-style init, PyTorch weight layouts."""
    def conv_init(k, cout, cin, kh, kw, transpose=False):
        k1, k2 = jax.random.split(k)
        fan_in = (cout if transpose else cin) * kh * kw
        bound = 1.0 / math.sqrt(fan_in)
        shape = (cin, cout, kh, kw) if transpose else (cout, cin, kh, kw)
        w = jax.random.uniform(k1, shape, jnp.float32, -bound, bound)
        b = jax.random.uniform(k2, (cout,), jnp.float32, -bound, bound)
        return w, b

    keys = jax.random.split(key, 5)
    return {
        "enc1": conv_init(keys[0], 8, 1, 4, 15),                 # Conv2d(1, 8, (4,15), pad (0,7))
        "enc2": conv_init(keys[1], 4, 8, 3, 3),                  # Conv2d(8, 4, 3, pad 1)
        "dec1": conv_init(keys[2], 8, 4, 3, 3, transpose=True),  # ConvT(4, 8, 3, s2, p1, op (0,1))
        "dec2": conv_init(keys[3], 8, 8, 3, 3, transpose=True),  # ConvT(8, 8, 3, s2, p (0,1), op 1)
        "dec3": conv_init(keys[4], 1, 8, 3, 3, transpose=True),  # ConvT(8, 1, 3, s1, p1)
    }


def prepare_params(params, h=4, w=16):
    """One-time host-side repack:
       * per-layer, per-kernel-row Toeplitz matrices T[i] of shape (Cin*Win, Cout*Wo)
         that fold channel contraction, kernel-W taps, W padding and stride-2
         zero-insertion into a single matmul (conv-transpose pre-flipped/transposed),
       * bias rows (1, Cout*Wo),
       * exact 0/1 even/odd selectors for MaxPool2d((1,2), 2)."""
    plan, _ = _build_plan(h, w)

    def equiv_weight(name, wt):
        wt = np.asarray(wt, np.float32)
        if name == "enc1":                       # (8,1,4,15): fold kernel-H into Cin
            return wt[:, 0][:, :, None, :]       # (Cout=8, Cin=4, kh=1, kw=15)
        if name == "enc2":
            return wt                            # (Cout, Cin, kh, kw)
        # ConvTranspose: (Cin, Cout, kh, kw) -> flipped + in/out-swapped equivalent conv
        return np.transpose(wt[:, :, ::-1, ::-1], (1, 0, 2, 3))

    def toeplitz_taps(wt_eq, lyr):
        cout, cin, kh, kw = wt_eq.shape
        t = np.zeros((kh, cin, lyr.w_in, cout, lyr.wo), np.float32)
        for wi in range(lyr.w_in):
            wp = lyr.pad_left + lyr.up_w * wi    # column of wi in the padded/upsampled row
            for wo in range(max(0, wp - (kw - 1)), min(lyr.wo - 1, wp) + 1):
                j = wp - wo                      # kernel-W tap index
                t[:, :, wi, :, wo] = np.transpose(wt_eq[:, :, :, j], (2, 1, 0))
        return jnp.asarray(t.reshape(kh, cin * lyr.w_in, cout * lyr.wo))

    def pool_selectors(cout, wo):
        wpool = (wo - 2) // 2 + 1
        se = np.zeros((cout * wo, cout * wpool), np.float32)
        so = np.zeros((cout * wo, cout * wpool), np.float32)
        for c in range(cout):
            for p in range(wpool):
                se[c * wo + 2 * p, c * wpool + p] = 1.0
                so[c * wo + 2 * p + 1, c * wpool + p] = 1.0
        return jnp.asarray(se), jnp.asarray(so)

    names = ["enc1", "enc2", "dec1", "dec2", "dec3"]
    kparams = []
    for name, lyr in zip(names, plan):
        wt, b = params[name]
        t = toeplitz_taps(equiv_weight(name, wt), lyr)
        b_row = jnp.asarray(np.repeat(np.asarray(b, np.float32), lyr.wo)[None, :])
        ops = [t, b_row]
        if lyr.pool:
            ops.extend(pool_selectors(lyr.cout, lyr.wo))
        kparams.append(tuple(ops))
    return kparams


# ---------------- pure-JAX reference (self-check only) ----------------

def reference_forward(params, x):
    hi = jax.lax.Precision.HIGHEST

    def conv(x, w, b, pad):
        y = jax.lax.conv_general_dilated(
            x, w, window_strides=(1, 1), padding=list(pad),
            dimension_numbers=("NCHW", "OIHW", "NCHW"), precision=hi)
        return y + b.reshape(1, -1, 1, 1)

    def convt(x, w, b, stride, pad, out_pad):
        kh, kw = w.shape[2], w.shape[3]
        w_c = jnp.transpose(jnp.flip(w, (2, 3)), (1, 0, 2, 3))
        padding = [(kh - 1 - pad[0], kh - 1 - pad[0] + out_pad[0]),
                   (kw - 1 - pad[1], kw - 1 - pad[1] + out_pad[1])]
        y = jax.lax.conv_general_dilated(
            x, w_c, window_strides=(1, 1), padding=padding, lhs_dilation=stride,
            dimension_numbers=("NCHW", "OIHW", "NCHW"), precision=hi)
        return y + b.reshape(1, -1, 1, 1)

    def pool(x):
        return jax.lax.reduce_window(x, -jnp.inf, jax.lax.max,
                                     (1, 1, 1, 2), (1, 1, 2, 2), "VALID")

    w, b = params["enc1"]; x = pool(jnp.tanh(conv(x, w, b, ((0, 0), (7, 7)))))
    w, b = params["enc2"]; x = pool(jnp.tanh(conv(x, w, b, ((1, 1), (1, 1)))))
    w, b = params["dec1"]; x = jnp.tanh(convt(x, w, b, (2, 2), (1, 1), (0, 1)))
    w, b = params["dec2"]; x = jnp.tanh(convt(x, w, b, (2, 2), (0, 1), (1, 1)))
    w, b = params["dec3"]; x = convt(x, w, b, (1, 1), (1, 1), (0, 0))
    return x


if __name__ == "__main__":
    key = jax.random.PRNGKey(0)
    pkey, xkey = jax.random.split(key)
    params = init_params(pkey)

    n, w = 16, 16                              # B_TILE=8 -> 128-lane tiles, 2 grid steps
    kparams = prepare_params(params, h=4, w=w)  # one-time host-side weight repacking
    x = jax.random.normal(xkey, (n, 1, 4, w), jnp.float32)

    fwd = jax.jit(conv_autoencoder_forward)
    y = fwd(kparams, x)
    jax.block_until_ready(y)

    assert y.shape == (n, 1, 4, w), y.shape
    assert bool(jnp.all(jnp.isfinite(y)))
    y_ref = reference_forward(params, x)
    err = float(jnp.max(jnp.abs(y - y_ref)))
    # NOTE: in-kernel dots use the default MXU f32 path; tolerance covers its rounding.
    assert err < 2e-2, f"mismatch vs reference: max abs err {err}"
    print("KERNEL_OK")
</pallas_src>

<mosaic_0001>
module attributes {stable_mosaic.version = 11 : i64} {
  func.func @_fused_forward_kernel(%arg0: i32, %arg1: memref<1x8x64xf32, #tpu.memory_space<vmem>>, %arg2: memref<1x64x128xf32, #tpu.memory_space<vmem>>, %arg3: memref<1x128xf32, #tpu.memory_space<vmem>>, %arg4: memref<128x64xf32, #tpu.memory_space<vmem>>, %arg5: memref<128x64xf32, #tpu.memory_space<vmem>>, %arg6: memref<3x64x32xf32, #tpu.memory_space<vmem>>, %arg7: memref<1x32xf32, #tpu.memory_space<vmem>>, %arg8: memref<32x16xf32, #tpu.memory_space<vmem>>, %arg9: memref<32x16xf32, #tpu.memory_space<vmem>>, %arg10: memref<3x16x64xf32, #tpu.memory_space<vmem>>, %arg11: memref<1x64xf32, #tpu.memory_space<vmem>>, %arg12: memref<3x64x128xf32, #tpu.memory_space<vmem>>, %arg13: memref<1x128xf32, #tpu.memory_space<vmem>>, %arg14: memref<3x128x16xf32, #tpu.memory_space<vmem>>, %arg15: memref<1x16xf32, #tpu.memory_space<vmem>>, %arg16: memref<1x8x64xf32, #tpu.memory_space<vmem>>) attributes {dimension_semantics = [#tpu.dimension_semantics<parallel>], iteration_bounds = array<i64: 2>, scalar_prefetch = 0 : i64, scratch_operands = 0 : i64, tpu.core_type = #tpu.core_type<tc>, window_params = [{transform_indices = @transform_0, window_bounds = array<i64: 1, 8, 64>}, {pipeline_mode = #tpu.pipeline_mode<synchronous>, transform_indices = @transform_1, window_bounds = array<i64: 1, 64, 128>}, {pipeline_mode = #tpu.pipeline_mode<synchronous>, transform_indices = @transform_2, window_bounds = array<i64: 1, 128>}, {pipeline_mode = #tpu.pipeline_mode<synchronous>, transform_indices = @transform_3, window_bounds = array<i64: 128, 64>}, {pipeline_mode = #tpu.pipeline_mode<synchronous>, transform_indices = @transform_4, window_bounds = array<i64: 128, 64>}, {pipeline_mode = #tpu.pipeline_mode<synchronous>, transform_indices = @transform_5, window_bounds = array<i64: 3, 64, 32>}, {pipeline_mode = #tpu.pipeline_mode<synchronous>, transform_indices = @transform_6, window_bounds = array<i64: 1, 32>}, {pipeline_mode = #tpu.pipeline_mode<synchronous>, transform_indices = @transform_7, window_bounds = array<i64: 32, 16>}, {pipeline_mode = #tpu.pipeline_mode<synchronous>, transform_indices = @transform_8, window_bounds = array<i64: 32, 16>}, {pipeline_mode = #tpu.pipeline_mode<synchronous>, transform_indices = @transform_9, window_bounds = array<i64: 3, 16, 64>}, {pipeline_mode = #tpu.pipeline_mode<synchronous>, transform_indices = @transform_10, window_bounds = array<i64: 1, 64>}, {pipeline_mode = #tpu.pipeline_mode<synchronous>, transform_indices = @transform_11, window_bounds = array<i64: 3, 64, 128>}, {pipeline_mode = #tpu.pipeline_mode<synchronous>, transform_indices = @transform_12, window_bounds = array<i64: 1, 128>}, {pipeline_mode = #tpu.pipeline_mode<synchronous>, transform_indices = @transform_13, window_bounds = array<i64: 3, 128, 16>}, {pipeline_mode = #tpu.pipeline_mode<synchronous>, transform_indices = @transform_14, window_bounds = array<i64: 1, 16>}, {transform_indices = @transform_15, window_bounds = array<i64: 1, 8, 64>}]} {
    %c0 = arith.constant 0 : index
    %c0_0 = arith.constant 0 : index
    %c0_1 = arith.constant 0 : index
    %0 = vector.load %arg1[%c0, %c0_0, %c0_1] : memref<1x8x64xf32, #tpu.memory_space<vmem>>, vector<1x8x64xf32>
    %1 = vector.shape_cast %0 : vector<1x8x64xf32> to vector<8x64xf32>
    %c0_2 = arith.constant 0 : index
    %c0_3 = arith.constant 0 : index
    %c0_4 = arith.constant 0 : index
    %2 = vector.load %arg2[%c0_2, %c0_3, %c0_4] : memref<1x64x128xf32, #tpu.memory_space<vmem>>, vector<1x64x128xf32>
    %3 = vector.shape_cast %2 : vector<1x64x128xf32> to vector<64x128xf32>
    %cst = arith.constant dense<0.000000e+00> : vector<8x128xf32>
    %4 = tpu.matmul %1, %3, %cst {dimension_numbers = #tpu.dot_dimension_numbers<[1], [0], [0], [1], [0, 0, 1, 1], [], []>} : vector<8x64xf32>, vector<64x128xf32>, vector<8x128xf32> -> vector<8x128xf32>
    %c0_5 = arith.constant 0 : index
    %c0_6 = arith.constant 0 : index
    %5 = vector.load %arg3[%c0_5, %c0_6] : memref<1x128xf32, #tpu.memory_space<vmem>>, vector<1x128xf32>
    %6 = vector.broadcast %5 : vector<1x128xf32> to vector<8x128xf32>
    %7 = arith.addf %4, %6 : vector<8x128xf32>
    %8 = math.tanh %7 : vector<8x128xf32>
    %c0_7 = arith.constant 0 : index
    %c0_8 = arith.constant 0 : index
    %9 = vector.load %arg4[%c0_7, %c0_8] : memref<128x64xf32, #tpu.memory_space<vmem>>, vector<128x64xf32>
    %c0_9 = arith.constant 0 : index
    %c0_10 = arith.constant 0 : index
    %10 = vector.load %arg5[%c0_9, %c0_10] : memref<128x64xf32, #tpu.memory_space<vmem>>, vector<128x64xf32>
    %cst_11 = arith.constant dense<0.000000e+00> : vector<8x64xf32>
    %11 = tpu.matmul %8, %9, %cst_11 {dimension_numbers = #tpu.dot_dimension_numbers<[1], [0], [0], [1], [0, 0, 1, 1], [], []>} : vector<8x128xf32>, vector<128x64xf32>, vector<8x64xf32> -> vector<8x64xf32>
    %cst_12 = arith.constant dense<0.000000e+00> : vector<8x64xf32>
    %12 = tpu.matmul %8, %10, %cst_12 {dimension_numbers = #tpu.dot_dimension_numbers<[1], [0], [0], [1], [0, 0, 1, 1], [], []>} : vector<8x128xf32>, vector<128x64xf32>, vector<8x64xf32> -> vector<8x64xf32>
    %13 = arith.maximumf %11, %12 : vector<8x64xf32>
    %c1 = arith.constant 1 : index
    %c0_13 = arith.constant 0 : index
    %c0_14 = arith.constant 0 : index
    %14 = vector.load %arg6[%c1, %c0_13, %c0_14] : memref<3x64x32xf32, #tpu.memory_space<vmem>>, vector<1x64x32xf32>
    %15 = vector.shape_cast %14 : vector<1x64x32xf32> to vector<64x32xf32>
    %cst_15 = arith.constant dense<0.000000e+00> : vector<8x32xf32>
    %16 = tpu.matmul %13, %15, %cst_15 {dimension_numbers = #tpu.dot_dimension_numbers<[1], [0], [0], [1], [0, 0, 1, 1], [], []>} : vector<8x64xf32>, vector<64x32xf32>, vector<8x32xf32> -> vector<8x32xf32>
    %c0_16 = arith.constant 0 : index
    %c0_17 = arith.constant 0 : index
    %17 = vector.load %arg7[%c0_16, %c0_17] : memref<1x32xf32, #tpu.memory_space<vmem>>, vector<1x32xf32>
    %18 = vector.broadcast %17 : vector<1x32xf32> to vector<8x32xf32>
    %19 = arith.addf %16, %18 : vector<8x32xf32>
    %20 = math.tanh %19 : vector<8x32xf32>
    %c0_18 = arith.constant 0 : index
    %c0_19 = arith.constant 0 : index
    %21 = vector.load %arg8[%c0_18, %c0_19] : memref<32x16xf32, #tpu.memory_space<vmem>>, vector<32x16xf32>
    %c0_20 = arith.constant 0 : index
    %c0_21 = arith.constant 0 : index
    %22 = vector.load %arg9[%c0_20, %c0_21] : memref<32x16xf32, #tpu.memory_space<vmem>>, vector<32x16xf32>
    %cst_22 = arith.constant dense<0.000000e+00> : vector<8x16xf32>
    %23 = tpu.matmul %20, %21, %cst_22 {dimension_numbers = #tpu.dot_dimension_numbers<[1], [0], [0], [1], [0, 0, 1, 1], [], []>} : vector<8x32xf32>, vector<32x16xf32>, vector<8x16xf32> -> vector<8x16xf32>
    %cst_23 = arith.constant dense<0.000000e+00> : vector<8x16xf32>
    %24 = tpu.matmul %20, %22, %cst_23 {dimension_numbers = #tpu.dot_dimension_numbers<[1], [0], [0], [1], [0, 0, 1, 1], [], []>} : vector<8x32xf32>, vector<32x16xf32>, vector<8x16xf32> -> vector<8x16xf32>
    %25 = arith.maximumf %23, %24 : vector<8x16xf32>
    %c1_24 = arith.constant 1 : index
    %c0_25 = arith.constant 0 : index
    %c0_26 = arith.constant 0 : index
    %26 = vector.load %arg10[%c1_24, %c0_25, %c0_26] : memref<3x16x64xf32, #tpu.memory_space<vmem>>, vector<1x16x64xf32>
    %27 = vector.shape_cast %26 : vector<1x16x64xf32> to vector<16x64xf32>
    %cst_27 = arith.constant dense<0.000000e+00> : vector<8x64xf32>
    %28 = tpu.matmul %25, %27, %cst_27 {dimension_numbers = #tpu.dot_dimension_numbers<[1], [0], [0], [1], [0, 0, 1, 1], [], []>} : vector<8x16xf32>, vector<16x64xf32>, vector<8x64xf32> -> vector<8x64xf32>
    %c0_28 = arith.constant 0 : index
    %c0_29 = arith.constant 0 : index
    %29 = vector.load %arg11[%c0_28, %c0_29] : memref<1x64xf32, #tpu.memory_space<vmem>>, vector<1x64xf32>
    %30 = vector.broadcast %29 : vector<1x64xf32> to vector<8x64xf32>
    %31 = arith.addf %28, %30 : vector<8x64xf32>
    %32 = math.tanh %31 : vector<8x64xf32>
    %c2 = arith.constant 2 : index
    %c0_30 = arith.constant 0 : index
    %c0_31 = arith.constant 0 : index
    %33 = vector.load %arg12[%c2, %c0_30, %c0_31] : memref<3x64x128xf32, #tpu.memory_space<vmem>>, vector<1x64x128xf32>
    %34 = vector.shape_cast %33 : vector<1x64x128xf32> to vector<64x128xf32>
    %cst_32 = arith.constant dense<0.000000e+00> : vector<8x128xf32>
    %35 = tpu.matmul %32, %34, %cst_32 {dimension_numbers = #tpu.dot_dimension_numbers<[1], [0], [0], [1], [0, 0, 1, 1], [], []>} : vector<8x64xf32>, vector<64x128xf32>, vector<8x128xf32> -> vector<8x128xf32>
    %c0_33 = arith.constant 0 : index
    %c0_34 = arith.constant 0 : index
    %36 = vector.load %arg13[%c0_33, %c0_34] : memref<1x128xf32, #tpu.memory_space<vmem>>, vector<1x128xf32>
    %37 = vector.broadcast %36 : vector<1x128xf32> to vector<8x128xf32>
    %38 = arith.addf %35, %37 : vector<8x128xf32>
    %39 = math.tanh %38 : vector<8x128xf32>
    %c1_35 = arith.constant 1 : index
    %c0_36 = arith.constant 0 : index
    %c0_37 = arith.constant 0 : index
    %40 = vector.load %arg12[%c1_35, %c0_36, %c0_37] : memref<3x64x128xf32, #tpu.memory_space<vmem>>, vector<1x64x128xf32>
    %41 = vector.shape_cast %40 : vector<1x64x128xf32> to vector<64x128xf32>
    %cst_38 = arith.constant dense<0.000000e+00> : vector<8x128xf32>
    %42 = tpu.matmul %32, %41, %cst_38 {dimension_numbers = #tpu.dot_dimension_numbers<[1], [0], [0], [1], [0, 0, 1, 1], [], []>} : vector<8x64xf32>, vector<64x128xf32>, vector<8x128xf32> -> vector<8x128xf32>
    %c0_39 = arith.constant 0 : index
    %c0_40 = arith.constant 0 : index
    %43 = vector.load %arg13[%c0_39, %c0_40] : memref<1x128xf32, #tpu.memory_space<vmem>>, vector<1x128xf32>
    %44 = vector.broadcast %43 : vector<1x128xf32> to vector<8x128xf32>
    %45 = arith.addf %42, %44 : vector<8x128xf32>
    %46 = math.tanh %45 : vector<8x128xf32>
    %c0_41 = arith.constant 0 : index
    %c0_42 = arith.constant 0 : index
    %c0_43 = arith.constant 0 : index
    %47 = vector.load %arg12[%c0_41, %c0_42, %c0_43] : memref<3x64x128xf32, #tpu.memory_space<vmem>>, vector<1x64x128xf32>
    %48 = vector.shape_cast %47 : vector<1x64x128xf32> to vector<64x128xf32>
    %cst_44 = arith.constant dense<0.000000e+00> : vector<8x128xf32>
    %49 = tpu.matmul %32, %48, %cst_44 {dimension_numbers = #tpu.dot_dimension_numbers<[1], [0], [0], [1], [0, 0, 1, 1], [], []>} : vector<8x64xf32>, vector<64x128xf32>, vector<8x128xf32> -> vector<8x128xf32>
    %c0_45 = arith.constant 0 : index
    %c0_46 = arith.constant 0 : index
    %50 = vector.load %arg13[%c0_45, %c0_46] : memref<1x128xf32, #tpu.memory_space<vmem>>, vector<1x128xf32>
    %51 = vector.broadcast %50 : vector<1x128xf32> to vector<8x128xf32>
    %52 = arith.addf %49, %51 : vector<8x128xf32>
    %53 = math.tanh %52 : vector<8x128xf32>
    %cst_47 = arith.constant 0.000000e+00 : f32
    %54 = vector.broadcast %cst_47 : f32 to vector<8x128xf32>
    %c0_48 = arith.constant 0 : index
    %c0_49 = arith.constant 0 : index
    %55 = vector.load %arg13[%c0_48, %c0_49] : memref<1x128xf32, #tpu.memory_space<vmem>>, vector<1x128xf32>
    %56 = vector.broadcast %55 : vector<1x128xf32> to vector<8x128xf32>
    %57 = arith.addf %54, %56 : vector<8x128xf32>
    %58 = math.tanh %57 : vector<8x128xf32>
    %c1_50 = arith.constant 1 : index
    %c0_51 = arith.constant 0 : index
    %c0_52 = arith.constant 0 : index
    %59 = vector.load %arg14[%c1_50, %c0_51, %c0_52] : memref<3x128x16xf32, #tpu.memory_space<vmem>>, vector<1x128x16xf32>
    %60 = vector.shape_cast %59 : vector<1x128x16xf32> to vector<128x16xf32>
    %cst_53 = arith.constant dense<0.000000e+00> : vector<8x16xf32>
    %61 = tpu.matmul %39, %60, %cst_53 {dimension_numbers = #tpu.dot_dimension_numbers<[1], [0], [0], [1], [0, 0, 1, 1], [], []>} : vector<8x128xf32>, vector<128x16xf32>, vector<8x16xf32> -> vector<8x16xf32>
    %c2_54 = arith.constant 2 : index
    %c0_55 = arith.constant 0 : index
    %c0_56 = arith.constant 0 : index
    %62 = vector.load %arg14[%c2_54, %c0_55, %c0_56] : memref<3x128x16xf32, #tpu.memory_space<vmem>>, vector<1x128x16xf32>
    %63 = vector.shape_cast %62 : vector<1x128x16xf32> to vector<128x16xf32>
    %cst_57 = arith.constant dense<0.000000e+00> : vector<8x16xf32>
    %64 = tpu.matmul %46, %63, %cst_57 {dimension_numbers = #tpu.dot_dimension_numbers<[1], [0], [0], [1], [0, 0, 1, 1], [], []>} : vector<8x128xf32>, vector<128x16xf32>, vector<8x16xf32> -> vector<8x16xf32>
    %65 = arith.addf %61, %64 : vector<8x16xf32>
    %c0_58 = arith.constant 0 : index
    %c0_59 = arith.constant 0 : index
    %66 = vector.load %arg15[%c0_58, %c0_59] : memref<1x16xf32, #tpu.memory_space<vmem>>, vector<1x16xf32>
    %67 = vector.broadcast %66 : vector<1x16xf32> to vector<8x16xf32>
    %68 = arith.addf %65, %67 : vector<8x16xf32>
    %c0_60 = arith.constant 0 : index
    %c0_61 = arith.constant 0 : index
    %c0_62 = arith.constant 0 : index
    %69 = vector.load %arg14[%c0_60, %c0_61, %c0_62] : memref<3x128x16xf32, #tpu.memory_space<vmem>>, vector<1x128x16xf32>
    %70 = vector.shape_cast %69 : vector<1x128x16xf32> to vector<128x16xf32>
    %cst_63 = arith.constant dense<0.000000e+00> : vector<8x16xf32>
    %71 = tpu.matmul %39, %70, %cst_63 {dimension_numbers = #tpu.dot_dimension_numbers<[1], [0], [0], [1], [0, 0, 1, 1], [], []>} : vector<8x128xf32>, vector<128x16xf32>, vector<8x16xf32> -> vector<8x16xf32>
    %c1_64 = arith.constant 1 : index
    %c0_65 = arith.constant 0 : index
    %c0_66 = arith.constant 0 : index
    %72 = vector.load %arg14[%c1_64, %c0_65, %c0_66] : memref<3x128x16xf32, #tpu.memory_space<vmem>>, vector<1x128x16xf32>
    %73 = vector.shape_cast %72 : vector<1x128x16xf32> to vector<128x16xf32>
    %cst_67 = arith.constant dense<0.000000e+00> : vector<8x16xf32>
    %74 = tpu.matmul %46, %73, %cst_67 {dimension_numbers = #tpu.dot_dimension_numbers<[1], [0], [0], [1], [0, 0, 1, 1], [], []>} : vector<8x128xf32>, vector<128x16xf32>, vector<8x16xf32> -> vector<8x16xf32>
    %75 = arith.addf %71, %74 : vector<8x16xf32>
    %c2_68 = arith.constant 2 : index
    %c0_69 = arith.constant 0 : index
    %c0_70 = arith.constant 0 : index
    %76 = vector.load %arg14[%c2_68, %c0_69, %c0_70] : memref<3x128x16xf32, #tpu.memory_space<vmem>>, vector<1x128x16xf32>
    %77 = vector.shape_cast %76 : vector<1x128x16xf32> to vector<128x16xf32>
    %cst_71 = arith.constant dense<0.000000e+00> : vector<8x16xf32>
    %78 = tpu.matmul %53, %77, %cst_71 {dimension_numbers = #tpu.dot_dimension_numbers<[1], [0], [0], [1], [0, 0, 1, 1], [], []>} : vector<8x128xf32>, vector<128x16xf32>, vector<8x16xf32> -> vector<8x16xf32>
    %79 = arith.addf %75, %78 : vector<8x16xf32>
    %c0_72 = arith.constant 0 : index
    %c0_73 = arith.constant 0 : index
    %80 = vector.load %arg15[%c0_72, %c0_73] : memref<1x16xf32, #tpu.memory_space<vmem>>, vector<1x16xf32>
    %81 = vector.broadcast %80 : vector<1x16xf32> to vector<8x16xf32>
    %82 = arith.addf %79, %81 : vector<8x16xf32>
    %c0_74 = arith.constant 0 : index
    %c0_75 = arith.constant 0 : index
    %c0_76 = arith.constant 0 : index
    %83 = vector.load %arg14[%c0_74, %c0_75, %c0_76] : memref<3x128x16xf32, #tpu.memory_space<vmem>>, vector<1x128x16xf32>
    %84 = vector.shape_cast %83 : vector<1x128x16xf32> to vector<128x16xf32>
    %cst_77 = arith.constant dense<0.000000e+00> : vector<8x16xf32>
    %85 = tpu.matmul %46, %84, %cst_77 {dimension_numbers = #tpu.dot_dimension_numbers<[1], [0], [0], [1], [0, 0, 1, 1], [], []>} : vector<8x128xf32>, vector<128x16xf32>, vector<8x16xf32> -> vector<8x16xf32>
    %c1_78 = arith.constant 1 : index
    %c0_79 = arith.constant 0 : index
    %c0_80 = arith.constant 0 : index
    %86 = vector.load %arg14[%c1_78, %c0_79, %c0_80] : memref<3x128x16xf32, #tpu.memory_space<vmem>>, vector<1x128x16xf32>
    %87 = vector.shape_cast %86 : vector<1x128x16xf32> to vector<128x16xf32>
    %cst_81 = arith.constant dense<0.000000e+00> : vector<8x16xf32>
    %88 = tpu.matmul %53, %87, %cst_81 {dimension_numbers = #tpu.dot_dimension_numbers<[1], [0], [0], [1], [0, 0, 1, 1], [], []>} : vector<8x128xf32>, vector<128x16xf32>, vector<8x16xf32> -> vector<8x16xf32>
    %89 = arith.addf %85, %88 : vector<8x16xf32>
    %c2_82 = arith.constant 2 : index
    %c0_83 = arith.constant 0 : index
    %c0_84 = arith.constant 0 : index
    %90 = vector.load %arg14[%c2_82, %c0_83, %c0_84] : memref<3x128x16xf32, #tpu.memory_space<vmem>>, vector<1x128x16xf32>
    %91 = vector.shape_cast %90 : vector<1x128x16xf32> to vector<128x16xf32>
    %cst_85 = arith.constant dense<0.000000e+00> : vector<8x16xf32>
    %92 = tpu.matmul %58, %91, %cst_85 {dimension_numbers = #tpu.dot_dimension_numbers<[1], [0], [0], [1], [0, 0, 1, 1], [], []>} : vector<8x128xf32>, vector<128x16xf32>, vector<8x16xf32> -> vector<8x16xf32>
    %93 = arith.addf %89, %92 : vector<8x16xf32>
    %c0_86 = arith.constant 0 : index
    %c0_87 = arith.constant 0 : index
    %94 = vector.load %arg15[%c0_86, %c0_87] : memref<1x16xf32, #tpu.memory_space<vmem>>, vector<1x16xf32>
    %95 = vector.broadcast %94 : vector<1x16xf32> to vector<8x16xf32>
    %96 = arith.addf %93, %95 : vector<8x16xf32>
    %c0_88 = arith.constant 0 : index
    %c0_89 = arith.constant 0 : index
    %c0_90 = arith.constant 0 : index
    %97 = vector.load %arg14[%c0_88, %c0_89, %c0_90] : memref<3x128x16xf32, #tpu.memory_space<vmem>>, vector<1x128x16xf32>
    %98 = vector.shape_cast %97 : vector<1x128x16xf32> to vector<128x16xf32>
    %cst_91 = arith.constant dense<0.000000e+00> : vector<8x16xf32>
    %99 = tpu.matmul %53, %98, %cst_91 {dimension_numbers = #tpu.dot_dimension_numbers<[1], [0], [0], [1], [0, 0, 1, 1], [], []>} : vector<8x128xf32>, vector<128x16xf32>, vector<8x16xf32> -> vector<8x16xf32>
    %c1_92 = arith.constant 1 : index
    %c0_93 = arith.constant 0 : index
    %c0_94 = arith.constant 0 : index
    %100 = vector.load %arg14[%c1_92, %c0_93, %c0_94] : memref<3x128x16xf32, #tpu.memory_space<vmem>>, vector<1x128x16xf32>
    %101 = vector.shape_cast %100 : vector<1x128x16xf32> to vector<128x16xf32>
    %cst_95 = arith.constant dense<0.000000e+00> : vector<8x16xf32>
    %102 = tpu.matmul %58, %101, %cst_95 {dimension_numbers = #tpu.dot_dimension_numbers<[1], [0], [0], [1], [0, 0, 1, 1], [], []>} : vector<8x128xf32>, vector<128x16xf32>, vector<8x16xf32> -> vector<8x16xf32>
    %103 = arith.addf %99, %102 : vector<8x16xf32>
    %c0_96 = arith.constant 0 : index
    %c0_97 = arith.constant 0 : index
    %104 = vector.load %arg15[%c0_96, %c0_97] : memref<1x16xf32, #tpu.memory_space<vmem>>, vector<1x16xf32>
    %105 = vector.broadcast %104 : vector<1x16xf32> to vector<8x16xf32>
    %106 = arith.addf %103, %105 : vector<8x16xf32>
    %c0_98 = arith.constant 0 : index
    %c0_99 = arith.constant 0 : index
    %c0_100 = arith.constant 0 : index
    %107 = vector.load %arg16[%c0_98, %c0_99, %c0_100] : memref<1x8x64xf32, #tpu.memory_space<vmem>>, vector<1x8x16xf32>
    %108 = vector.shape_cast %107 : vector<1x8x16xf32> to vector<8x16xf32>
    %109 = vector.shape_cast %68 : vector<8x16xf32> to vector<1x8x16xf32>
    tpu.vector_store %arg16[%c0_98, %c0_99, %c0_100], %109 {strides = array<i32>} : memref<1x8x64xf32, #tpu.memory_space<vmem>>, vector<1x8x16xf32>,
    %c0_101 = arith.constant 0 : index
    %c0_102 = arith.constant 0 : index
    %c16 = arith.constant 16 : index
    %110 = vector.load %arg16[%c0_101, %c0_102, %c16] : memref<1x8x64xf32, #tpu.memory_space<vmem>>, vector<1x8x16xf32>
    %111 = vector.shape_cast %110 : vector<1x8x16xf32> to vector<8x16xf32>
    %112 = vector.shape_cast %82 : vector<8x16xf32> to vector<1x8x16xf32>
    tpu.vector_store %arg16[%c0_101, %c0_102, %c16], %112 {strides = array<i32>} : memref<1x8x64xf32, #tpu.memory_space<vmem>>, vector<1x8x16xf32>,
    %c0_103 = arith.constant 0 : index
    %c0_104 = arith.constant 0 : index
    %c32 = arith.constant 32 : index
    %113 = vector.load %arg16[%c0_103, %c0_104, %c32] : memref<1x8x64xf32, #tpu.memory_space<vmem>>, vector<1x8x16xf32>
    %114 = vector.shape_cast %113 : vector<1x8x16xf32> to vector<8x16xf32>
    %115 = vector.shape_cast %96 : vector<8x16xf32> to vector<1x8x16xf32>
    tpu.vector_store %arg16[%c0_103, %c0_104, %c32], %115 {strides = array<i32>} : memref<1x8x64xf32, #tpu.memory_space<vmem>>, vector<1x8x16xf32>,
    %c0_105 = arith.constant 0 : index
    %c0_106 = arith.constant 0 : index
    %c48 = arith.constant 48 : index
    %116 = vector.load %arg16[%c0_105, %c0_106, %c48] : memref<1x8x64xf32, #tpu.memory_space<vmem>>, vector<1x8x16xf32>
    %117 = vector.shape_cast %116 : vector<1x8x16xf32> to vector<8x16xf32>
    %118 = vector.shape_cast %106 : vector<8x16xf32> to vector<1x8x16xf32>
    tpu.vector_store %arg16[%c0_105, %c0_106, %c48], %118 {strides = array<i32>} : memref<1x8x64xf32, #tpu.memory_space<vmem>>, vector<1x8x16xf32>,
    return
  }
  func.func @transform_0(%arg0: i32) -> (i32, i32, i32) {
    %c0_i32 = arith.constant 0 : i32
    %c0_i32_0 = arith.constant 0 : i32
    %c0_i32_1 = arith.constant 0 : i32
    return %arg0, %c0_i32, %c0_i32_0 : i32, i32, i32
  }
  func.func @transform_1(%arg0: i32) -> (i32, i32, i32) {
    %c0_i32 = arith.constant 0 : i32
    %c0_i32_0 = arith.constant 0 : i32
    %c0_i32_1 = arith.constant 0 : i32
    %c0_i32_2 = arith.constant 0 : i32
    return %c0_i32, %c0_i32_0, %c0_i32_1 : i32, i32, i32
  }
  func.func @transform_2(%arg0: i32) -> (i32, i32) {
    %c0_i32 = arith.constant 0 : i32
    %c0_i32_0 = arith.constant 0 : i32
    %c0_i32_1 = arith.constant 0 : i32
    return %c0_i32, %c0_i32_0 : i32, i32
  }
  func.func @transform_3(%arg0: i32) -> (i32, i32) {
    %c0_i32 = arith.constant 0 : i32
    %c0_i32_0 = arith.constant 0 : i32
    %c0_i32_1 = arith.constant 0 : i32
    return %c0_i32, %c0_i32_0 : i32, i32
  }
  func.func @transform_4(%arg0: i32) -> (i32, i32) {
    %c0_i32 = arith.constant 0 : i32
    %c0_i32_0 = arith.constant 0 : i32
    %c0_i32_1 = arith.constant 0 : i32
    return %c0_i32, %c0_i32_0 : i32, i32
  }
  func.func @transform_5(%arg0: i32) -> (i32, i32, i32) {
    %c0_i32 = arith.constant 0 : i32
    %c0_i32_0 = arith.constant 0 : i32
    %c0_i32_1 = arith.constant 0 : i32
    %c0_i32_2 = arith.constant 0 : i32
    return %c0_i32, %c0_i32_0, %c0_i32_1 : i32, i32, i32
  }
  func.func @transform_6(%arg0: i32) -> (i32, i32) {
    %c0_i32 = arith.constant 0 : i32
    %c0_i32_0 = arith.constant 0 : i32
    %c0_i32_1 = arith.constant 0 : i32
    return %c0_i32, %c0_i32_0 : i32, i32
  }
  func.func @transform_7(%arg0: i32) -> (i32, i32) {
    %c0_i32 = arith.constant 0 : i32
    %c0_i32_0 = arith.constant 0 : i32
    %c0_i32_1 = arith.constant 0 : i32
    return %c0_i32, %c0_i32_0 : i32, i32
  }
  func.func @transform_8(%arg0: i32) -> (i32, i32) {
    %c0_i32 = arith.constant 0 : i32
    %c0_i32_0 = arith.constant 0 : i32
    %c0_i32_1 = arith.constant 0 : i32
    return %c0_i32, %c0_i32_0 : i32, i32
  }
  func.func @transform_9(%arg0: i32) -> (i32, i32, i32) {
    %c0_i32 = arith.constant 0 : i32
    %c0_i32_0 = arith.constant 0 : i32
    %c0_i32_1 = arith.constant 0 : i32
    %c0_i32_2 = arith.constant 0 : i32
    return %c0_i32, %c0_i32_0, %c0_i32_1 : i32, i32, i32
  }
  func.func @transform_10(%arg0: i32) -> (i32, i32) {
    %c0_i32 = arith.constant 0 : i32
    %c0_i32_0 = arith.constant 0 : i32
    %c0_i32_1 = arith.constant 0 : i32
    return %c0_i32, %c0_i32_0 : i32, i32
  }
  func.func @transform_11(%arg0: i32) -> (i32, i32, i32) {
    %c0_i32 = arith.constant 0 : i32
    %c0_i32_0 = arith.constant 0 : i32
    %c0_i32_1 = arith.constant 0 : i32
    %c0_i32_2 = arith.constant 0 : i32
    return %c0_i32, %c0_i32_0, %c0_i32_1 : i32, i32, i32
  }
  func.func @transform_12(%arg0: i32) -> (i32, i32) {
    %c0_i32 = arith.constant 0 : i32
    %c0_i32_0 = arith.constant 0 : i32
    %c0_i32_1 = arith.constant 0 : i32
    return %c0_i32, %c0_i32_0 : i32, i32
  }
  func.func @transform_13(%arg0: i32) -> (i32, i32, i32) {
    %c0_i32 = arith.constant 0 : i32
    %c0_i32_0 = arith.constant 0 : i32
    %c0_i32_1 = arith.constant 0 : i32
    %c0_i32_2 = arith.constant 0 : i32
    return %c0_i32, %c0_i32_0, %c0_i32_1 : i32, i32, i32
  }
  func.func @transform_14(%arg0: i32) -> (i32, i32) {
    %c0_i32 = arith.constant 0 : i32
    %c0_i32_0 = arith.constant 0 : i32
    %c0_i32_1 = arith.constant 0 : i32
    return %c0_i32, %c0_i32_0 : i32, i32
  }
  func.func @transform_15(%arg0: i32) -> (i32, i32, i32) {
    %c0_i32 = arith.constant 0 : i32
    %c0_i32_0 = arith.constant 0 : i32
    %c0_i32_1 = arith.constant 0 : i32
    return %arg0, %c0_i32, %c0_i32_0 : i32, i32, i32
  }
}

</mosaic_0001>

<llo_original>
// kernel: conv_autoencoder_forward.1
$region0: #{conv_autoencoder_forward.1}
  #allocation0 [shape = 'u32[]', space=smem, size = 0x4, offset = 0x4, fixed_abs, tag = 'smem constant byte address 0x4 - core index']
  #allocation1 [shape = 'u32[72,128]{1,0:T(1,128)}', space=vmem, size = 0x9000, scoped, tag = 'internal scratch']
  %s0 = inlined_call_operand.vmem [shape: f32[2,8,64], index: 0, kind: input, shape index: {}]
  %s1 = inlined_call_operand.vmem [shape: f32[1,64,128], index: 1, kind: input, shape index: {}]
  %s2 = inlined_call_operand.vmem [shape: f32[1,128], index: 2, kind: input, shape index: {}]
  %s3 = inlined_call_operand.vmem [shape: f32[128,64], index: 3, kind: input, shape index: {}]
  %s4 = inlined_call_operand.vmem [shape: f32[128,64], index: 4, kind: input, shape index: {}]
  %s5 = inlined_call_operand.vmem [shape: f32[3,64,32], index: 5, kind: input, shape index: {}]
  %s6 = inlined_call_operand.vmem [shape: f32[1,32], index: 6, kind: input, shape index: {}]
  %s7 = inlined_call_operand.vmem [shape: f32[32,16], index: 7, kind: input, shape index: {}]
  %s8 = inlined_call_operand.vmem [shape: f32[32,16], index: 8, kind: input, shape index: {}]
  %s9 = inlined_call_operand.vmem [shape: f32[3,16,64], index: 9, kind: input, shape index: {}]
  %s10 = inlined_call_operand.vmem [shape: f32[1,64], index: 10, kind: input, shape index: {}]
  %s11 = inlined_call_operand.vmem [shape: f32[3,64,128], index: 11, kind: input, shape index: {}]
  %s12 = inlined_call_operand.vmem [shape: f32[1,128], index: 12, kind: input, shape index: {}]
  %s13 = inlined_call_operand.vmem [shape: f32[3,128,16], index: 13, kind: input, shape index: {}]
  %s14 = inlined_call_operand.vmem [shape: f32[1,16], index: 14, kind: input, shape index: {}]
  %s15 = inlined_call_operand.vmem [shape: f32[2,8,64], index: 15, kind: output, shape index: {}]
  %s16 = sld [smem:[#allocation0]]
  $region93: #{conv_autoencoder_forward.1} parent=0
    _
  %s18 = ssub.s32 1, %s16
  %s19 = scalar_select 0, %s18, %s16
  loop: start=0, step=1, limit=4
  $region2: #{conv_autoencoder_forward.1} parent=0 // loop_pre_header
    _
  $region3: #{conv_autoencoder_forward.1} parent=0 // loop_header
    %s21 = sphi 0, %s25
    %p22 = scmp.ge.s32.totalorder %s21, 4
    %s31 = sphi 0, %s33
    %s34 = sphi 0, %s31
    %s35 = sphi 0, %s34
    %s51 = sphi 0, %s35
    %s55 = sphi 0, %s55
    %s57 = sphi 0, %s55
    %s58 = sphi 0, %s57
    %s72 = sphi 0, %s58
    %s76 = sphi 0, %s76
    %s78 = sphi 0, %s76
    %s79 = sphi 0, %s78
    %s93 = sphi 0, %s79
    %s97 = sphi 0, %s97
    %s99 = sphi 0, %s97
    %s100 = sphi 0, %s99
    %s114 = sphi 0, %s100
    %s118 = sphi 0, %s118
    %s120 = sphi 0, %s118
    %s121 = sphi 0, %s120
    %s135 = sphi 0, %s121
    %s139 = sphi 0, %s139
    %s141 = sphi 0, %s139
    %s142 = sphi 0, %s141
    %s156 = sphi 0, %s142
    %s160 = sphi 0, %s160
    %s162 = sphi 0, %s160
    %s163 = sphi 0, %s162
    %s177 = sphi 0, %s163
    %s181 = sphi 0, %s181
    %s183 = sphi 0, %s181
    %s184 = sphi 0, %s183
    %s198 = sphi 0, %s184
    %s202 = sphi 0, %s202
    %s204 = sphi 0, %s202
    %s205 = sphi 0, %s204
    %s219 = sphi 0, %s205
    %s223 = sphi 0, %s223
    %s225 = sphi 0, %s223
    %s226 = sphi 0, %s225
    %s240 = sphi 0, %s226
    %s244 = sphi 0, %s244
    %s246 = sphi 0, %s244
    %s247 = sphi 0, %s246
    %s261 = sphi 0, %s247
    %s265 = sphi 0, %s265
    %s267 = sphi 0, %s265
    %s268 = sphi 0, %s267
    %s282 = sphi 0, %s268
    %s286 = sphi 0, %s286
    %s288 = sphi 0, %s286
    %s289 = sphi 0, %s288
    %s303 = sphi 0, %s289
    %s307 = sphi 0, %s307
    %s309 = sphi 0, %s307
    %s310 = sphi 0, %s309
    %s324 = sphi 0, %s310
    %s328 = sphi 0, %s328
    %s330 = sphi 0, %s328
    %s331 = sphi 0, %s330
    %s345 = sphi 0, %s331
    %s351 = sphi 0, %s353
    %s354 = sphi 0, %s351
    %s355 = sphi 0, %s354
    %s371 = sphi 0, %s355
  $region4: #{conv_autoencoder_forward.1} parent=0 // loop_header_branch
    %24 = sbr.rel (%p22) target = $region8
  $region5: #{conv_autoencoder_forward.1} parent=0 // loop_body
    %s26 = ssub.s32 %s21, 1
    %s27 = ssub.s32 %s21, 2
    %s28 = sadd.s32 %s21, 1
    %s29 = ssub.s32 %s21, %s28
    %p30 = scmp.eq.s32.totalorder %s29, 0
    %s32 = sadd.s32 %s31, 1
    %s33 = scalar_select %p30, %s31, %s32
    %p36 = pneg %p30
    %p37 = scmp.eq.s32.totalorder %s21, 1
    %p38 = por %p36, %p37
    %p39 = scmp.ne.s32.totalorder %s31, %s34
    %p40 = scmp.eq.s32.totalorder %s21, 0
    %p41 = por %p39, %p40
    %p42 = scmp.ne.s32.totalorder %s31, %s34
    %p43 = scmp.eq.s32.totalorder %s26, 1
    %p44 = por %p42, %p43
    %p45 = scmp.ne.s32.totalorder %s34, %s35
    %p46 = scmp.eq.s32.totalorder %s26, 0
    %p47 = por %p45, %p46
    %p48 = scmp.ne.s32.totalorder %s34, %s35
    %p49 = scmp.eq.s32.totalorder %s27, 1
    %p50 = por %p48, %p49
    %p52 = scmp.ne.s32.totalorder %s35, %s51
    %p53 = scmp.eq.s32.totalorder %s27, 0
    %p54 = por %p52, %p53
    %s56 = sadd.s32 %s55, 1
    %p59 = scmp.eq.s32.totalorder %s21, 1
    %p60 = scmp.ne.s32.totalorder %s55, %s57
    %p61 = scmp.eq.s32.totalorder %s21, 0
    %p62 = por %p60, %p61
    %p63 = scmp.ne.s32.totalorder %s55, %s57
    %p64 = scmp.eq.s32.totalorder %s26, 1
    %p65 = por %p63, %p64
    %p66 = scmp.ne.s32.totalorder %s57, %s58
    %p67 = scmp.eq.s32.totalorder %s26, 0
    %p68 = por %p66, %p67
    %p69 = scmp.ne.s32.totalorder %s57, %s58
    %p70 = scmp.eq.s32.totalorder %s27, 1
    %p71 = por %p69, %p70
    %p73 = scmp.ne.s32.totalorder %s58, %s72
    %p74 = scmp.eq.s32.totalorder %s27, 0
    %p75 = por %p73, %p74
    %s77 = sadd.s32 %s76, 1
    %p80 = scmp.eq.s32.totalorder %s21, 1
    %p81 = scmp.ne.s32.totalorder %s76, %s78
    %p82 = scmp.eq.s32.totalorder %s21, 0
    %p83 = por %p81, %p82
    %p84 = scmp.ne.s32.totalorder %s76, %s78
    %p85 = scmp.eq.s32.totalorder %s26, 1
    %p86 = por %p84, %p85
    %p87 = scmp.ne.s32.totalorder %s78, %s79
    %p88 = scmp.eq.s32.totalorder %s26, 0
    %p89 = por %p87, %p88
    %p90 = scmp.ne.s32.totalorder %s78, %s79
    %p91 = scmp.eq.s32.totalorder %s27, 1
    %p92 = por %p90, %p91
    %p94 = scmp.ne.s32.totalorder %s79, %s93
    %p95 = scmp.eq.s32.totalorder %s27, 0
    %p96 = por %p94, %p95
    %s98 = sadd.s32 %s97, 1
    %p101 = scmp.eq.s32.totalorder %s21, 1
    %p102 = scmp.ne.s32.totalorder %s97, %s99
    %p103 = scmp.eq.s32.totalorder %s21, 0
    %p104 = por %p102, %p103
    %p105 = scmp.ne.s32.totalorder %s97, %s99
    %p106 = scmp.eq.s32.totalorder %s26, 1
    %p107 = por %p105, %p106
    %p108 = scmp.ne.s32.totalorder %s99, %s100
    %p109 = scmp.eq.s32.totalorder %s26, 0
    %p110 = por %p108, %p109
    %p111 = scmp.ne.s32.totalorder %s99, %s100
    %p112 = scmp.eq.s32.totalorder %s27, 1
    %p113 = por %p111, %p112
    %p115 = scmp.ne.s32.totalorder %s100, %s114
    %p116 = scmp.eq.s32.totalorder %s27, 0
    %p117 = por %p115, %p116
    %s119 = sadd.s32 %s118, 1
    %p122 = scmp.eq.s32.totalorder %s21, 1
    %p123 = scmp.ne.s32.totalorder %s118, %s120
    %p124 = scmp.eq.s32.totalorder %s21, 0
    %p125 = por %p123, %p124
    %p126 = scmp.ne.s32.totalorder %s118, %s120
    %p127 = scmp.eq.s32.totalorder %s26, 1
    %p128 = por %p126, %p127
    %p129 = scmp.ne.s32.totalorder %s120, %s121
    %p130 = scmp.eq.s32.totalorder %s26, 0
    %p131 = por %p129, %p130
    %p132 = scmp.ne.s32.totalorder %s120, %s121
    %p133 = scmp.eq.s32.totalorder %s27, 1
    %p134 = por %p132, %p133
    %p136 = scmp.ne.s32.totalorder %s121, %s135
    %p137 = scmp.eq.s32.totalorder %s27, 0
    %p138 = por %p136, %p137
    %s140 = sadd.s32 %s139, 1
    %p143 = scmp.eq.s32.totalorder %s21, 1
    %p144 = scmp.ne.s32.totalorder %s139, %s141
    %p145 = scmp.eq.s32.totalorder %s21, 0
    %p146 = por %p144, %p145
    %p147 = scmp.ne.s32.totalorder %s139, %s141
    %p148 = scmp.eq.s32.totalorder %s26, 1
    %p149 = por %p147, %p148
    %p150 = scmp.ne.s32.totalorder %s141, %s142
    %p151 = scmp.eq.s32.totalorder %s26, 0
    %p152 = por %p150, %p151
    %p153 = scmp.ne.s32.totalorder %s141, %s142
    %p154 = scmp.eq.s32.totalorder %s27, 1
    %p155 = por %p153, %p154
    %p157 = scmp.ne.s32.totalorder %s142, %s156
    %p158 = scmp.eq.s32.totalorder %s27, 0
    %p159 = por %p157, %p158
    %s161 = sadd.s32 %s160, 1
    %p164 = scmp.eq.s32.totalorder %s21, 1
    %p165 = scmp.ne.s32.totalorder %s160, %s162
    %p166 = scmp.eq.s32.totalorder %s21, 0
    %p167 = por %p165, %p166
    %p168 = scmp.ne.s32.totalorder %s160, %s162
    %p169 = scmp.eq.s32.totalorder %s26, 1
    %p170 = por %p168, %p169
    %p171 = scmp.ne.s32.totalorder %s162, %s163
    %p172 = scmp.eq.s32.totalorder %s26, 0
    %p173 = por %p171, %p172
    %p174 = scmp.ne.s32.totalorder %s162, %s163
    %p175 = scmp.eq.s32.totalorder %s27, 1
    %p176 = por %p174, %p175
    %p178 = scmp.ne.s32.totalorder %s163, %s177
    %p179 = scmp.eq.s32.totalorder %s27, 0
    %p180 = por %p178, %p179
    %s182 = sadd.s32 %s181, 1
    %p185 = scmp.eq.s32.totalorder %s21, 1
    %p186 = scmp.ne.s32.totalorder %s181, %s183
    %p187 = scmp.eq.s32.totalorder %s21, 0
    %p188 = por %p186, %p187
    %p189 = scmp.ne.s32.totalorder %s181, %s183
    %p190 = scmp.eq.s32.totalorder %s26, 1
    %p191 = por %p189, %p190
    %p192 = scmp.ne.s32.totalorder %s183, %s184
    %p193 = scmp.eq.s32.totalorder %s26, 0
    %p194 = por %p192, %p193
    %p195 = scmp.ne.s32.totalorder %s183, %s184
    %p196 = scmp.eq.s32.totalorder %s27, 1
    %p197 = por %p195, %p196
    %p199 = scmp.ne.s32.totalorder %s184, %s198
    %p200 = scmp.eq.s32.totalorder %s27, 0
    %p201 = por %p199, %p200
    %s203 = sadd.s32 %s202, 1
    %p206 = scmp.eq.s32.totalorder %s21, 1
    %p207 = scmp.ne.s32.totalorder %s202, %s204
    %p208 = scmp.eq.s32.totalorder %s21, 0
    %p209 = por %p207, %p208
    %p210 = scmp.ne.s32.totalorder %s202, %s204
    %p211 = scmp.eq.s32.totalorder %s26, 1
    %p212 = por %p210, %p211
    %p213 = scmp.ne.s32.totalorder %s204, %s205
    %p214 = scmp.eq.s32.totalorder %s26, 0
    %p215 = por %p213, %p214
    %p216 = scmp.ne.s32.totalorder %s204, %s205
    %p217 = scmp.eq.s32.totalorder %s27, 1
    %p218 = por %p216, %p217
    %p220 = scmp.ne.s32.totalorder %s205, %s219
    %p221 = scmp.eq.s32.totalorder %s27, 0
    %p222 = por %p220, %p221
    %s224 = sadd.s32 %s223, 1
    %p227 = scmp.eq.s32.totalorder %s21, 1
    %p228 = scmp.ne.s32.totalorder %s223, %s225
    %p229 = scmp.eq.s32.totalorder %s21, 0
    %p230 = por %p228, %p229
    %p231 = scmp.ne.s32.totalorder %s223, %s225
    %p232 = scmp.eq.s32.totalorder %s26, 1
    %p233 = por %p231, %p232
    %p234 = scmp.ne.s32.totalorder %s225, %s226
    %p235 = scmp.eq.s32.totalorder %s26, 0
    %p236 = por %p234, %p235
    %p237 = scmp.ne.s32.totalorder %s225, %s226
    %p238 = scmp.eq.s32.totalorder %s27, 1
    %p239 = por %p237, %p238
    %p241 = scmp.ne.s32.totalorder %s226, %s240
    %p242 = scmp.eq.s32.totalorder %s27, 0
    %p243 = por %p241, %p242
    %s245 = sadd.s32 %s244, 1
    %p248 = scmp.eq.s32.totalorder %s21, 1
    %p249 = scmp.ne.s32.totalorder %s244, %s246
    %p250 = scmp.eq.s32.totalorder %s21, 0
    %p251 = por %p249, %p250
    %p252 = scmp.ne.s32.totalorder %s244, %s246
    %p253 = scmp.eq.s32.totalorder %s26, 1
    %p254 = por %p252, %p253
    %p255 = scmp.ne.s32.totalorder %s246, %s247
    %p256 = scmp.eq.s32.totalorder %s26, 0
    %p257 = por %p255, %p256
    %p258 = scmp.ne.s32.totalorder %s246, %s247
    %p259 = scmp.eq.s32.totalorder %s27, 1
    %p260 = por %p258, %p259
    %p262 = scmp.ne.s32.totalorder %s247, %s261
    %p263 = scmp.eq.s32.totalorder %s27, 0
    %p264 = por %p262, %p263
    %s266 = sadd.s32 %s265, 1
    %p269 = scmp.eq.s32.totalorder %s21, 1
    %p270 = scmp.ne.s32.totalorder %s265, %s267
    %p271 = scmp.eq.s32.totalorder %s21, 0
    %p272 = por %p270, %p271
    %p273 = scmp.ne.s32.totalorder %s265, %s267
    %p274 = scmp.eq.s32.totalorder %s26, 1
    %p275 = por %p273, %p274
    %p276 = scmp.ne.s32.totalorder %s267, %s268
    %p277 = scmp.eq.s32.totalorder %s26, 0
    %p278 = por %p276, %p277
    %p279 = scmp.ne.s32.totalorder %s267, %s268
    %p280 = scmp.eq.s32.totalorder %s27, 1
    %p281 = por %p279, %p280
    %p283 = scmp.ne.s32.totalorder %s268, %s282
    %p284 = scmp.eq.s32.totalorder %s27, 0
    %p285 = por %p283, %p284
    %s287 = sadd.s32 %s286, 1
    %p290 = scmp.eq.s32.totalorder %s21, 1
    %p291 = scmp.ne.s32.totalorder %s286, %s288
    %p292 = scmp.eq.s32.totalorder %s21, 0
    %p293 = por %p291, %p292
    %p294 = scmp.ne.s32.totalorder %s286, %s288
    %p295 = scmp.eq.s32.totalorder %s26, 1
    %p296 = por %p294, %p295
    %p297 = scmp.ne.s32.totalorder %s288, %s289
    %p298 = scmp.eq.s32.totalorder %s26, 0
    %p299 = por %p297, %p298
    %p300 = scmp.ne.s32.totalorder %s288, %s289
    %p301 = scmp.eq.s32.totalorder %s27, 1
    %p302 = por %p300, %p301
    %p304 = scmp.ne.s32.totalorder %s289, %s303
    %p305 = scmp.eq.s32.totalorder %s27, 0
    %p306 = por %p304, %p305
    %s308 = sadd.s32 %s307, 1
    %p311 = scmp.eq.s32.totalorder %s21, 1
    %p312 = scmp.ne.s32.totalorder %s307, %s309
    %p313 = scmp.eq.s32.totalorder %s21, 0
    %p314 = por %p312, %p313
    %p315 = scmp.ne.s32.totalorder %s307, %s309
    %p316 = scmp.eq.s32.totalorder %s26, 1
    %p317 = por %p315, %p316
    %p318 = scmp.ne.s32.totalorder %s309, %s310
    %p319 = scmp.eq.s32.totalorder %s26, 0
    %p320 = por %p318, %p319
    %p321 = scmp.ne.s32.totalorder %s309, %s310
    %p322 = scmp.eq.s32.totalorder %s27, 1
    %p323 = por %p321, %p322
    %p325 = scmp.ne.s32.totalorder %s310, %s324
    %p326 = scmp.eq.s32.totalorder %s27, 0
    %p327 = por %p325, %p326
    %s329 = sadd.s32 %s328, 1
    %p332 = scmp.eq.s32.totalorder %s21, 1
    %p333 = scmp.ne.s32.totalorder %s328, %s330
    %p334 = scmp.eq.s32.totalorder %s21, 0
    %p335 = por %p333, %p334
    %p336 = scmp.ne.s32.totalorder %s328, %s330
    %p337 = scmp.eq.s32.totalorder %s26, 1
    %p338 = por %p336, %p337
    %p339 = scmp.ne.s32.totalorder %s330, %s331
    %p340 = scmp.eq.s32.totalorder %s26, 0
    %p341 = por %p339, %p340
    %p342 = scmp.ne.s32.totalorder %s330, %s331
    %p343 = scmp.eq.s32.totalorder %s27, 1
    %p344 = por %p342, %p343
    %p346 = scmp.ne.s32.totalorder %s331, %s345
    %p347 = scmp.eq.s32.totalorder %s27, 0
    %p348 = por %p346, %p347
    %s349 = ssub.s32 %s21, %s28
    %p350 = scmp.eq.s32.totalorder %s349, 0
    %s352 = sadd.s32 %s351, 1
    %s353 = scalar_select %p350, %s351, %s352
    %p356 = pneg %p350
    %p357 = scmp.eq.s32.totalorder %s21, 1
    %p358 = por %p356, %p357
    %p359 = scmp.ne.s32.totalorder %s351, %s354
    %p360 = scmp.eq.s32.totalorder %s21, 0
    %p361 = por %p359, %p360
    %p362 = scmp.ne.s32.totalorder %s351, %s354
    %p363 = scmp.eq.s32.totalorder %s26, 1
    %p364 = por %p362, %p363
    %p365 = scmp.ne.s32.totalorder %s354, %s355
    %p366 = scmp.eq.s32.totalorder %s26, 0
    %p367 = por %p365, %p366
    %p368 = scmp.ne.s32.totalorder %s354, %s355
    %p369 = scmp.eq.s32.totalorder %s27, 1
    %p370 = por %p368, %p369
    %p372 = scmp.ne.s32.totalorder %s355, %s371
    %p373 = scmp.eq.s32.totalorder %s27, 0
    %p374 = por %p372, %p373
    %p375 = scmp.le.s32.totalorder 1, %s21
    %p376 = scmp.lt.s32.totalorder %s21, 3
    %p377 = pnand %p375, %p376
    %p378 = pneg %p377
    // Predicated region
    $region9: #{conv_autoencoder_forward.1} parent=5 // pred_check
      _
    $region10: #{conv_autoencoder_forward.1} parent=5 // pred_check_branch
      %380 = sbr.rel (%p377) target = $region12
    $region11: #{conv_autoencoder_forward.1} parent=5 // pred_region
      %s381 = ssub.s32 %s21, 1
      // Predicated region
      $region13: #{conv_autoencoder_forward.1} parent=11 // pred_check
        %p382 = pneg %p68
      $region14: #{conv_autoencoder_forward.1} parent=11 // pred_check_branch
        %384 = sbr.rel (%p382) target = $region16
      $region15: #{conv_autoencoder_forward.1} parent=11 // pred_region
        _
      $region16: #{conv_autoencoder_forward.1} parent=11 // pred_fallthru
        _
      // Predicated region
      $region17: #{conv_autoencoder_forward.1} parent=11 // pred_check
        %p385 = pneg %p89
      $region18: #{conv_autoencoder_forward.1} parent=11 // pred_check_branch
        %387 = sbr.rel (%p385) target = $region20
      $region19: #{conv_autoencoder_forward.1} parent=11 // pred_region
        _
      $region20: #{conv_autoencoder_forward.1} parent=11 // pred_fallthru
        _
      // Predicated region
      $region21: #{conv_autoencoder_forward.1} parent=11 // pred_check
        %p388 = pneg %p110
      $region22: #{conv_autoencoder_forward.1} parent=11 // pred_check_branch
        %390 = sbr.rel (%p388) target = $region24
      $region23: #{conv_autoencoder_forward.1} parent=11 // pred_region
        _
      $region24: #{conv_autoencoder_forward.1} parent=11 // pred_fallthru
        _
      // Predicated region
      $region25: #{conv_autoencoder_forward.1} parent=11 // pred_check
        %p391 = pneg %p131
      $region26: #{conv_autoencoder_forward.1} parent=11 // pred_check_branch
        %393 = sbr.rel (%p391) target = $region28
      $region27: #{conv_autoencoder_forward.1} parent=11 // pred_region
        _
      $region28: #{conv_autoencoder_forward.1} parent=11 // pred_fallthru
        _
      // Predicated region
      $region29: #{conv_autoencoder_forward.1} parent=11 // pred_check
        %p394 = pneg %p152
      $region30: #{conv_autoencoder_forward.1} parent=11 // pred_check_branch
        %396 = sbr.rel (%p394) target = $region32
      $region31: #{conv_autoencoder_forward.1} parent=11 // pred_region
        _
      $region32: #{conv_autoencoder_forward.1} parent=11 // pred_fallthru
        _
      // Predicated region
      $region33: #{conv_autoencoder_forward.1} parent=11 // pred_check
        %p397 = pneg %p173
      $region34: #{conv_autoencoder_forward.1} parent=11 // pred_check_branch
        %399 = sbr.rel (%p397) target = $region36
      $region35: #{conv_autoencoder_forward.1} parent=11 // pred_region
        _
      $region36: #{conv_autoencoder_forward.1} parent=11 // pred_fallthru
        _
      // Predicated region
      $region37: #{conv_autoencoder_forward.1} parent=11 // pred_check
        %p400 = pneg %p194
      $region38: #{conv_autoencoder_forward.1} parent=11 // pred_check_branch
        %402 = sbr.rel (%p400) target = $region40
      $region39: #{conv_autoencoder_forward.1} parent=11 // pred_region
        _
      $region40: #{conv_autoencoder_forward.1} parent=11 // pred_fallthru
        _
      // Predicated region
      $region41: #{conv_autoencoder_forward.1} parent=11 // pred_check
        %p403 = pneg %p215
      $region42: #{conv_autoencoder_forward.1} parent=11 // pred_check_branch
        %405 = sbr.rel (%p403) target = $region44
      $region43: #{conv_autoencoder_forward.1} parent=11 // pred_region
        _
      $region44: #{conv_autoencoder_forward.1} parent=11 // pred_fallthru
        _
      // Predicated region
      $region45: #{conv_autoencoder_forward.1} parent=11 // pred_check
        %p406 = pneg %p236
      $region46: #{conv_autoencoder_forward.1} parent=11 // pred_check_branch
        %408 = sbr.rel (%p406) target = $region48
      $region47: #{conv_autoencoder_forward.1} parent=11 // pred_region
        _
      $region48: #{conv_autoencoder_forward.1} parent=11 // pred_fallthru
        _
      // Predicated region
      $region49: #{conv_autoencoder_forward.1} parent=11 // pred_check
        %p409 = pneg %p257
      $region50: #{conv_autoencoder_forward.1} parent=11 // pred_check_branch
        %411 = sbr.rel (%p409) target = $region52
      $region51: #{conv_autoencoder_forward.1} parent=11 // pred_region
        _
      $region52: #{conv_autoencoder_forward.1} parent=11 // pred_fallthru
        _
      // Predicated region
      $region53: #{conv_autoencoder_forward.1} parent=11 // pred_check
        %p412 = pneg %p278
      $region54: #{conv_autoencoder_forward.1} parent=11 // pred_check_branch
        %414 = sbr.rel (%p412) target = $region56
      $region55: #{conv_autoencoder_forward.1} parent=11 // pred_region
        _
      $region56: #{conv_autoencoder_forward.1} parent=11 // pred_fallthru
        _
      // Predicated region
      $region57: #{conv_autoencoder_forward.1} parent=11 // pred_check
        %p415 = pneg %p299
      $region58: #{conv_autoencoder_forward.1} parent=11 // pred_check_branch
        %417 = sbr.rel (%p415) target = $region60
      $region59: #{conv_autoencoder_forward.1} parent=11 // pred_region
        _
      $region60: #{conv_autoencoder_forward.1} parent=11 // pred_fallthru
        _
      // Predicated region
      $region61: #{conv_autoencoder_forward.1} parent=11 // pred_check
        %p418 = pneg %p320
      $region62: #{conv_autoencoder_forward.1} parent=11 // pred_check_branch
        %420 = sbr.rel (%p418) target = $region64
      $region63: #{conv_autoencoder_forward.1} parent=11 // pred_region
        _
      $region64: #{conv_autoencoder_forward.1} parent=11 // pred_fallthru
        _
      // Predicated region
      $region65: #{conv_autoencoder_forward.1} parent=11 // pred_check
        %p421 = pneg %p341
      $region66: #{conv_autoencoder_forward.1} parent=11 // pred_check_branch
        %423 = sbr.rel (%p421) target = $region68
      $region67: #{conv_autoencoder_forward.1} parent=11 // pred_region
        _
      $region68: #{conv_autoencoder_forward.1} parent=11 // pred_fallthru
        _
    $region12: #{conv_autoencoder_forward.1} parent=5 // pred_fallthru
      _
    %p424 = scmp.lt.s32.totalorder %s21, 2
    // Predicated region
    $region69: #{conv_autoencoder_forward.1} parent=5 // pred_check
      %p425 = pneg %p424
    $region70: #{conv_autoencoder_forward.1} parent=5 // pred_check_branch
      %427 = sbr.rel (%p425) target = $region72
    $region71: #{conv_autoencoder_forward.1} parent=5 // pred_region
      // Predicated region
      $region73: #{conv_autoencoder_forward.1} parent=71 // pred_check
        %p428 = pneg %p41
      $region74: #{conv_autoencoder_forward.1} parent=71 // pred_check_branch
        %430 = sbr.rel (%p428) target = $region76
      $region75: #{conv_autoencoder_forward.1} parent=71 // pred_region
        %p431 = scmp.lt.s32.totalorder %s21, 1
        %s432 = scalar_select %p431, %s21, 1
        %s433 = smul.addr %s432, 8
        %s434 = scalar_lea.vmem %s0, %s433
      $region76: #{conv_autoencoder_forward.1} parent=71 // pred_fallthru
        _
    $region72: #{conv_autoencoder_forward.1} parent=5 // pred_fallthru
      _
    %p435 = scmp.le.s32.totalorder 1, %s21
    %p436 = scmp.lt.s32.totalorder %s21, 3
    %p437 = pnand %p435, %p436
    %p438 = pneg %p437
    // Predicated region
    $region77: #{conv_autoencoder_forward.1} parent=5 // pred_check
      _
    $region78: #{conv_autoencoder_forward.1} parent=5 // pred_check_branch
      %440 = sbr.rel (%p437) target = $region80
    $region79: #{conv_autoencoder_forward.1} parent=5 // pred_region
      %s441 = ssub.s32 %s21, 1
      %p442 = scmp.lt.s32.totalorder %s26, 1
      %s443 = scalar_select %p442, %s26, 1
      %s444 = smul.addr %s443, 8
      %s445 = scalar_lea.vmem %s0, %s444
      %p446 = pneg %p47
      %p447 = pneg %p44
      %p448 = pneg %p68
      %p449 = pneg %p65
      %p450 = pneg %p89
      %p451 = pneg %p86
      %p452 = pneg %p110
      %p453 = pneg %p107
      %p454 = pneg %p131
      %p455 = pneg %p128
      %p456 = pneg %p152
      %p457 = pneg %p149
      %p458 = pneg %p173
      %p459 = pneg %p170
      %p460 = pneg %p194
      %p461 = pneg %p191
      %p462 = pneg %p215
      %p463 = pneg %p212
      %p464 = pneg %p236
      %p465 = pneg %p233
      %p466 = pneg %p257
      %p467 = pneg %p254
      %p468 = pneg %p278
      %p469 = pneg %p275
      %p470 = pneg %p299
      %p471 = pneg %p296
      %p472 = pneg %p320
      %p473 = pneg %p317
      %p474 = pneg %p341
      %p475 = pneg %p338
      %p476 = pneg %p367
      %p477 = pneg %p364
      %p478 = scmp.lt.s32.totalorder %s26, 1
      %s479 = scalar_select %p478, %s26, 1
      %s480 = smul.addr %s479, 8
      %s481 = scalar_lea.vmem %s15, %s480
      %p482 = scmp.lt.s32.totalorder %s26, 1
      %s483 = scalar_select %p482, %s26, 1
      %s484 = smul.addr %s483, 8
      %s485 = scalar_lea.vmem %s0, %s484
      %p486 = scmp.lt.s32.totalorder %s26, 1
      %s487 = scalar_select %p486, %s26, 1
      %s488 = smul.addr %s487, 8
      %s489 = scalar_lea.vmem %s15, %s488
      %v490 = vld [vmem:[%s485] sm:$0xff]
      %v491 = vld [vmem:[%s1] sm:$0xff]
      %v492 = vld [vmem:[%s1 + $0x8] sm:$0xff]
      %v493 = vld [vmem:[%s1 + $0x10] sm:$0xff]
      %v494 = vld [vmem:[%s1 + $0x18] sm:$0xff]
      %v495 = vld [vmem:[%s1 + $0x20] sm:$0xff]
      %v496 = vld [vmem:[%s1 + $0x28] sm:$0xff]
      %v497 = vld [vmem:[%s1 + $0x30] sm:$0xff]
      %v498 = vld [vmem:[%s1 + $0x38] sm:$0xff]
      %v499 = vld [vmem:[%s2] sm:$0x1]
      %v501 = vperm.slane %v499, 0
      %vm503 = vcmask 523264
      %v505 = vsel %vm503, %v490, 0
      %507 = vmatpush.msra.mxu0 0.0
      %508 = vmatpush.msra.mxu0 0.0
      %509 = vmatpush.msra.mxu0 0.0
      %510 = vmatpush.msra.mxu0 0.0
      %511 = vmatpush.msra.mxu0 0.0
      %512 = vmatpush.msra.mxu0 0.0
      %513 = vmatpush.msra.mxu0 0.0
      %514 = vmatpush.msra.mxu0 0.0
      %515 = vmatpush.msra.mxu0 %v498
      %516 = vmatpush.msra.mxu0 %v497
      %517 = vmatpush.msra.mxu0 %v496
      %518 = vmatpush.msra.mxu0 %v495
      %519 = vmatpush.msra.mxu0 %v494
      %520 = vmatpush.msra.mxu0 %v493
      %521 = vmatpush.msra.mxu0 %v492
      %522 = vmatpush.msra.mxu0 %v491
      %523 = vmatmul.f32.gmra.mxu0 %v505
      %v524 = vpop.f32.mrf.mxu0
      %v525 = vadd.f32 %v501, %v524
      %526 = vdwg.mxu0
      %v527 = vtanh.pop %v525
      %v528 = vld [vmem:[%s3] sm:$0xff]
      %v529 = vld [vmem:[%s3 + $0x8] sm:$0xff]
      %v530 = vld [vmem:[%s3 + $0x10] sm:$0xff]
      %v531 = vld [vmem:[%s3 + $0x18] sm:$0xff]
      %v532 = vld [vmem:[%s3 + $0x20] sm:$0xff]
      %v533 = vld [vmem:[%s3 + $0x28] sm:$0xff]
      %v534 = vld [vmem:[%s3 + $0x30] sm:$0xff]
      %v535 = vld [vmem:[%s3 + $0x38] sm:$0xff]
      %v536 = vld [vmem:[%s3 + $0x40] sm:$0xff]
      %v537 = vld [vmem:[%s3 + $0x48] sm:$0xff]
      %v538 = vld [vmem:[%s3 + $0x50] sm:$0xff]
      %v539 = vld [vmem:[%s3 + $0x58] sm:$0xff]
      %v540 = vld [vmem:[%s3 + $0x60] sm:$0xff]
      %v541 = vld [vmem:[%s3 + $0x68] sm:$0xff]
      %v542 = vld [vmem:[%s3 + $0x70] sm:$0xff]
      %v543 = vld [vmem:[%s3 + $0x78] sm:$0xff]
      %v544 = vld [vmem:[%s4] sm:$0xff]
      %v545 = vld [vmem:[%s4 + $0x8] sm:$0xff]
      %v546 = vld [vmem:[%s4 + $0x10] sm:$0xff]
      %v547 = vld [vmem:[%s4 + $0x18] sm:$0xff]
      %v548 = vld [vmem:[%s4 + $0x20] sm:$0xff]
      %v549 = vld [vmem:[%s4 + $0x28] sm:$0xff]
      %v550 = vld [vmem:[%s4 + $0x30] sm:$0xff]
      %v551 = vld [vmem:[%s4 + $0x38] sm:$0xff]
      %v552 = vld [vmem:[%s4 + $0x40] sm:$0xff]
      %v553 = vld [vmem:[%s4 + $0x48] sm:$0xff]
      %v554 = vld [vmem:[%s4 + $0x50] sm:$0xff]
      %v555 = vld [vmem:[%s4 + $0x58] sm:$0xff]
      %v556 = vld [vmem:[%s4 + $0x60] sm:$0xff]
      %v557 = vld [vmem:[%s4 + $0x68] sm:$0xff]
      %v558 = vld [vmem:[%s4 + $0x70] sm:$0xff]
      %v559 = vld [vmem:[%s4 + $0x78] sm:$0xff]
      %560 = vmatpush.msra.mxu0 %v543
      %561 = vmatpush.msra.mxu0 %v542
      %562 = vmatpush.msra.mxu0 %v541
      %563 = vmatpush.msra.mxu0 %v540
      %564 = vmatpush.msra.mxu0 %v539
      %565 = vmatpush.msra.mxu0 %v538
      %566 = vmatpush.msra.mxu0 %v537
      %567 = vmatpush.msra.mxu0 %v536
      %568 = vmatpush.msra.mxu0 %v535
      %569 = vmatpush.msra.mxu0 %v534
      %570 = vmatpush.msra.mxu0 %v533
      %571 = vmatpush.msra.mxu0 %v532
      %572 = vmatpush.msra.mxu0 %v531
      %573 = vmatpush.msra.mxu0 %v530
      %574 = vmatpush.msra.mxu0 %v529
      %575 = vmatpush.msra.mxu0 %v528
      %576 = vmatmul.f32.gmra.mxu0 %v527
      %v577 = vpop.f32.mrf.mxu0
      %v578 = vadd.f32 0.0, %v577
      %579 = vdwg.mxu0
      %580 = vmatpush.msra.mxu0 %v559
      %581 = vmatpush.msra.mxu0 %v558
      %582 = vmatpush.msra.mxu0 %v557
      %583 = vmatpush.msra.mxu0 %v556
      %584 = vmatpush.msra.mxu0 %v555
      %585 = vmatpush.msra.mxu0 %v554
      %586 = vmatpush.msra.mxu0 %v553
      %587 = vmatpush.msra.mxu0 %v552
      %588 = vmatpush.msra.mxu0 %v551
      %589 = vmatpush.msra.mxu0 %v550
      %590 = vmatpush.msra.mxu0 %v549
      %591 = vmatpush.msra.mxu0 %v548
      %592 = vmatpush.msra.mxu0 %v547
      %593 = vmatpush.msra.mxu0 %v546
      %594 = vmatpush.msra.mxu0 %v545
      %595 = vmatpush.msra.mxu0 %v544
      %596 = vmatmul.f32.gmra.mxu0 %v527
      %v597 = vpop.f32.mrf.mxu0
      %v598 = vadd.f32 0.0, %v597
      %599 = vdwg.mxu0
      %v600 = vmax.f32 %v578, %v598
      %s601 = scalar_lea.vmem %s5, 64
      %v602 = vld [vmem:[%s601] sm:$0xff]
      %v603 = vld [vmem:[%s601 + $0x8] sm:$0xff]
      %v604 = vld [vmem:[%s601 + $0x10] sm:$0xff]
      %v605 = vld [vmem:[%s601 + $0x18] sm:$0xff]
      %v606 = vld [vmem:[%s601 + $0x20] sm:$0xff]
      %v607 = vld [vmem:[%s601 + $0x28] sm:$0xff]
      %v608 = vld [vmem:[%s601 + $0x30] sm:$0xff]
      %v609 = vld [vmem:[%s601 + $0x38] sm:$0xff]
      %v610 = vld [vmem:[%s6] sm:$0x1]
      %v612 = vperm.slane %v610, 0
      %v615 = vsel %vm503, %v600, 0
      %617 = vmatpush.msra.mxu0 0.0
      %618 = vmatpush.msra.mxu0 0.0
      %619 = vmatpush.msra.mxu0 0.0
      %620 = vmatpush.msra.mxu0 0.0
      %621 = vmatpush.msra.mxu0 0.0
      %622 = vmatpush.msra.mxu0 0.0
      %623 = vmatpush.msra.mxu0 0.0
      %624 = vmatpush.msra.mxu0 0.0
      %625 = vmatpush.msra.mxu0 %v609
      %626 = vmatpush.msra.mxu0 %v608
      %627 = vmatpush.msra.mxu0 %v607
      %628 = vmatpush.msra.mxu0 %v606
      %629 = vmatpush.msra.mxu0 %v605
      %630 = vmatpush.msra.mxu0 %v604
      %631 = vmatpush.msra.mxu0 %v603
      %632 = vmatpush.msra.mxu0 %v602
      %633 = vmatmul.f32.gmra.mxu0 %v615
      %v634 = vpop.f32.mrf.mxu0
      %v635 = vadd.f32 %v612, %v634
      %636 = vdwg.mxu0
      %v637 = vtanh.pop %v635
      %v638 = vld [vmem:[%s7] sm:$0xff]
      %v639 = vld [vmem:[%s7 + $0x8] sm:$0xff]
      %v640 = vld [vmem:[%s7 + $0x10] sm:$0xff]
      %v641 = vld [vmem:[%s7 + $0x18] sm:$0xff]
      %v642 = vld [vmem:[%s8] sm:$0xff]
      %v643 = vld [vmem:[%s8 + $0x8] sm:$0xff]
      %v644 = vld [vmem:[%s8 + $0x10] sm:$0xff]
      %v645 = vld [vmem:[%s8 + $0x18] sm:$0xff]
      %vm646 = vcmask 261120
      %v648 = vsel %vm646, %v637, 0
      %650 = vmatpush.msra.mxu0 0.0
      %651 = vmatpush.msra.mxu0 0.0
      %652 = vmatpush.msra.mxu0 0.0
      %653 = vmatpush.msra.mxu0 0.0
      %654 = vmatpush.msra.mxu0 0.0
      %655 = vmatpush.msra.mxu0 0.0
      %656 = vmatpush.msra.mxu0 0.0
      %657 = vmatpush.msra.mxu0 0.0
      %658 = vmatpush.msra.mxu0 0.0
      %659 = vmatpush.msra.mxu0 0.0
      %660 = vmatpush.msra.mxu0 0.0
      %661 = vmatpush.msra.mxu0 0.0
      %662 = vmatpush.msra.mxu0 %v641
      %663 = vmatpush.msra.mxu0 %v640
      %664 = vmatpush.msra.mxu0 %v639
      %665 = vmatpush.msra.mxu0 %v638
      %666 = vmatmul.f32.gmra.mxu0 %v648
      %v667 = vpop.f32.mrf.mxu0
      %v668 = vadd.f32 0.0, %v667
      %669 = vdwg.mxu0
      %670 = vmatpush.msra.mxu0 0.0
      %671 = vmatpush.msra.mxu0 0.0
      %672 = vmatpush.msra.mxu0 0.0
      %673 = vmatpush.msra.mxu0 0.0
      %674 = vmatpush.msra.mxu0 0.0
      %675 = vmatpush.msra.mxu0 0.0
      %676 = vmatpush.msra.mxu0 0.0
      %677 = vmatpush.msra.mxu0 0.0
      %678 = vmatpush.msra.mxu0 0.0
      %679 = vmatpush.msra.mxu0 0.0
      %680 = vmatpush.msra.mxu0 0.0
      %681 = vmatpush.msra.mxu0 0.0
      %682 = vmatpush.msra.mxu0 %v645
      %683 = vmatpush.msra.mxu0 %v644
      %684 = vmatpush.msra.mxu0 %v643
      %685 = vmatpush.msra.mxu0 %v642
      %686 = vmatmul.f32.gmra.mxu0 %v648
      %v687 = vpop.f32.mrf.mxu0
      %v688 = vadd.f32 0.0, %v687
      %689 = vdwg.mxu0
      %v690 = vmax.f32 %v668, %v688
      %s691 = scalar_lea.vmem %s9, 16
      %v692 = vld [vmem:[%s691] sm:$0xff]
      %v693 = vld [vmem:[%s691 + $0x8] sm:$0xff]
      %v694 = vld [vmem:[%s10] sm:$0x1]
      %v696 = vperm.slane %v694, 0
      %vm698 = vcmask 130048
      %v700 = vsel %vm698, %v690, 0
      %702 = vmatpush.msra.mxu0 0.0
      %703 = vmatpush.msra.mxu0 0.0
      %704 = vmatpush.msra.mxu0 0.0
      %705 = vmatpush.msra.mxu0 0.0
      %706 = vmatpush.msra.mxu0 0.0
      %707 = vmatpush.msra.mxu0 0.0
      %708 = vmatpush.msra.mxu0 0.0
      %709 = vmatpush.msra.mxu0 0.0
      %710 = vmatpush.msra.mxu0 0.0
      %711 = vmatpush.msra.mxu0 0.0
      %712 = vmatpush.msra.mxu0 0.0
      %713 = vmatpush.msra.mxu0 0.0
      %714 = vmatpush.msra.mxu0 0.0
      %715 = vmatpush.msra.mxu0 0.0
      %716 = vmatpush.msra.mxu0 %v693
      %717 = vmatpush.msra.mxu0 %v692
      %718 = vmatmul.f32.gmra.mxu0 %v700
      %v719 = vpop.f32.mrf.mxu0
      %v720 = vadd.f32 %v696, %v719
      %721 = vdwg.mxu0
      %v722 = vtanh.pop %v720
      %s723 = scalar_lea.vmem %s11, 128
      %v724 = vld [vmem:[%s723] sm:$0xff]
      %v725 = vld [vmem:[%s723 + $0x8] sm:$0xff]
      %v726 = vld [vmem:[%s723 + $0x10] sm:$0xff]
      %v727 = vld [vmem:[%s723 + $0x18] sm:$0xff]
      %v728 = vld [vmem:[%s723 + $0x20] sm:$0xff]
      %v729 = vld [vmem:[%s723 + $0x28] sm:$0xff]
      %v730 = vld [vmem:[%s723 + $0x30] sm:$0xff]
      %v731 = vld [vmem:[%s723 + $0x38] sm:$0xff]
      %v732 = vld [vmem:[%s12] sm:$0x1]
      %v734 = vperm.slane %v732, 0
      %v737 = vsel %vm503, %v722, 0
      %739 = vmatpush.msra.mxu0 0.0
      %740 = vmatpush.msra.mxu0 0.0
      %741 = vmatpush.msra.mxu0 0.0
      %742 = vmatpush.msra.mxu0 0.0
      %743 = vmatpush.msra.mxu0 0.0
      %744 = vmatpush.msra.mxu0 0.0
      %745 = vmatpush.msra.mxu0 0.0
      %746 = vmatpush.msra.mxu0 0.0
      %747 = vmatpush.msra.mxu0 %v731
      %748 = vmatpush.msra.mxu0 %v730
      %749 = vmatpush.msra.mxu0 %v729
      %750 = vmatpush.msra.mxu0 %v728
      %751 = vmatpush.msra.mxu0 %v727
      %752 = vmatpush.msra.mxu0 %v726
      %753 = vmatpush.msra.mxu0 %v725
      %754 = vmatpush.msra.mxu0 %v724
      %755 = vmatmul.f32.gmra.mxu0 %v737
      %v756 = vpop.f32.mrf.mxu0
      %v757 = vadd.f32 %v734, %v756
      %758 = vdwg.mxu0
      %v759 = vtanh.pop %v757
      %s760 = scalar_lea.vmem %s11, 64
      %v761 = vld [vmem:[%s760] sm:$0xff]
      %v762 = vld [vmem:[%s760 + $0x8] sm:$0xff]
      %v763 = vld [vmem:[%s760 + $0x10] sm:$0xff]
      %v764 = vld [vmem:[%s760 + $0x18] sm:$0xff]
      %v765 = vld [vmem:[%s760 + $0x20] sm:$0xff]
      %v766 = vld [vmem:[%s760 + $0x28] sm:$0xff]
      %v767 = vld [vmem:[%s760 + $0x30] sm:$0xff]
      %v768 = vld [vmem:[%s760 + $0x38] sm:$0xff]
      %769 = vmatpush.msra.mxu0 0.0
      %770 = vmatpush.msra.mxu0 0.0
      %771 = vmatpush.msra.mxu0 0.0
      %772 = vmatpush.msra.mxu0 0.0
      %773 = vmatpush.msra.mxu0 0.0
      %774 = vmatpush.msra.mxu0 0.0
      %775 = vmatpush.msra.mxu0 0.0
      %776 = vmatpush.msra.mxu0 0.0
      %777 = vmatpush.msra.mxu0 %v768
      %778 = vmatpush.msra.mxu0 %v767
      %779 = vmatpush.msra.mxu0 %v766
      %780 = vmatpush.msra.mxu0 %v765
      %781 = vmatpush.msra.mxu0 %v764
      %782 = vmatpush.msra.mxu0 %v763
      %783 = vmatpush.msra.mxu0 %v762
      %784 = vmatpush.msra.mxu0 %v761
      %785 = vmatmul.f32.gmra.mxu0 %v737
      %v786 = vpop.f32.mrf.mxu0
      %v787 = vadd.f32 %v734, %v786
      %788 = vdwg.mxu0
      %v789 = vtanh.pop %v787
      %v790 = vld [vmem:[%s11] sm:$0xff]
      %v791 = vld [vmem:[%s11 + $0x8] sm:$0xff]
      %v792 = vld [vmem:[%s11 + $0x10] sm:$0xff]
      %v793 = vld [vmem:[%s11 + $0x18] sm:$0xff]
      %v794 = vld [vmem:[%s11 + $0x20] sm:$0xff]
      %v795 = vld [vmem:[%s11 + $0x28] sm:$0xff]
      %v796 = vld [vmem:[%s11 + $0x30] sm:$0xff]
      %v797 = vld [vmem:[%s11 + $0x38] sm:$0xff]
      %798 = vmatpush.msra.mxu0 0.0
      %799 = vmatpush.msra.mxu0 0.0
      %800 = vmatpush.msra.mxu0 0.0
      %801 = vmatpush.msra.mxu0 0.0
      %802 = vmatpush.msra.mxu0 0.0
      %803 = vmatpush.msra.mxu0 0.0
      %804 = vmatpush.msra.mxu0 0.0
      %805 = vmatpush.msra.mxu0 0.0
      %806 = vmatpush.msra.mxu0 %v797
      %807 = vmatpush.msra.mxu0 %v796
      %808 = vmatpush.msra.mxu0 %v795
      %809 = vmatpush.msra.mxu0 %v794
      %810 = vmatpush.msra.mxu0 %v793
      %811 = vmatpush.msra.mxu0 %v792
      %812 = vmatpush.msra.mxu0 %v791
      %813 = vmatpush.msra.mxu0 %v790
      %814 = vmatmul.f32.gmra.mxu0 %v737
      %v815 = vpop.f32.mrf.mxu0
      %v816 = vadd.f32 %v734, %v815
      %817 = vdwg.mxu0
      %v818 = vtanh.pop %v816
      %v819 = vadd.f32 %v734, 0.0
      %v820 = vtanh.pop %v819
      %s821 = scalar_lea.vmem %s13, 128
      %v822 = vld [vmem:[%s821] sm:$0xff]
      %v823 = vld [vmem:[%s821 + $0x8] sm:$0xff]
      %v824 = vld [vmem:[%s821 + $0x10] sm:$0xff]
      %v825 = vld [vmem:[%s821 + $0x18] sm:$0xff]
      %v826 = vld [vmem:[%s821 + $0x20] sm:$0xff]
      %v827 = vld [vmem:[%s821 + $0x28] sm:$0xff]
      %v828 = vld [vmem:[%s821 + $0x30] sm:$0xff]
      %v829 = vld [vmem:[%s821 + $0x38] sm:$0xff]
      %v830 = vld [vmem:[%s821 + $0x40] sm:$0xff]
      %v831 = vld [vmem:[%s821 + $0x48] sm:$0xff]
      %v832 = vld [vmem:[%s821 + $0x50] sm:$0xff]
      %v833 = vld [vmem:[%s821 + $0x58] sm:$0xff]
      %v834 = vld [vmem:[%s821 + $0x60] sm:$0xff]
      %v835 = vld [vmem:[%s821 + $0x68] sm:$0xff]
      %v836 = vld [vmem:[%s821 + $0x70] sm:$0xff]
      %v837 = vld [vmem:[%s821 + $0x78] sm:$0xff]
      %s838 = scalar_lea.vmem %s13, 256
      %v839 = vld [vmem:[%s838] sm:$0xff]
      %v840 = vld [vmem:[%s838 + $0x8] sm:$0xff]
      %v841 = vld [vmem:[%s838 + $0x10] sm:$0xff]
      %v842 = vld [vmem:[%s838 + $0x18] sm:$0xff]
      %v843 = vld [vmem:[%s838 + $0x20] sm:$0xff]
      %v844 = vld [vmem:[%s838 + $0x28] sm:$0xff]
      %v845 = vld [vmem:[%s838 + $0x30] sm:$0xff]
      %v846 = vld [vmem:[%s838 + $0x38] sm:$0xff]
      %v847 = vld [vmem:[%s838 + $0x40] sm:$0xff]
      %v848 = vld [vmem:[%s838 + $0x48] sm:$0xff]
      %v849 = vld [vmem:[%s838 + $0x50] sm:$0xff]
      %v850 = vld [vmem:[%s838 + $0x58] sm:$0xff]
      %v851 = vld [vmem:[%s838 + $0x60] sm:$0xff]
      %v852 = vld [vmem:[%s838 + $0x68] sm:$0xff]
      %v853 = vld [vmem:[%s838 + $0x70] sm:$0xff]
      %v854 = vld [vmem:[%s838 + $0x78] sm:$0xff]
      %855 = vmatpush.msra.mxu0 %v854
      %856 = vmatpush.msra.mxu0 %v853
      %857 = vmatpush.msra.mxu0 %v852
      %858 = vmatpush.msra.mxu0 %v851
      %859 = vmatpush.msra.mxu0 %v850
      %860 = vmatpush.msra.mxu0 %v849
      %861 = vmatpush.msra.mxu0 %v848
      %862 = vmatpush.msra.mxu0 %v847
      %863 = vmatpush.msra.mxu0 %v846
      %864 = vmatpush.msra.mxu0 %v845
      %865 = vmatpush.msra.mxu0 %v844
      %866 = vmatpush.msra.mxu0 %v843
      %867 = vmatpush.msra.mxu0 %v842
      %868 = vmatpush.msra.mxu0 %v841
      %869 = vmatpush.msra.mxu0 %v840
      %870 = vmatpush.msra.mxu0 %v839
      %871 = vmatmul.f32.gmra.mxu0 %v789
      %v872 = vpop.f32.mrf.mxu0
      %v873 = vadd.f32 0.0, %v872
      %874 = vdwg.mxu0
      %875 = vmatpush.msra.mxu0 %v837
      %876 = vmatpush.msra.mxu0 %v836
      %877 = vmatpush.msra.mxu0 %v835
      %878 = vmatpush.msra.mxu0 %v834
      %879 = vmatpush.msra.mxu0 %v833
      %880 = vmatpush.msra.mxu0 %v832
      %881 = vmatpush.msra.mxu0 %v831
      %882 = vmatpush.msra.mxu0 %v830
      %883 = vmatpush.msra.mxu0 %v829
      %884 = vmatpush.msra.mxu0 %v828
      %885 = vmatpush.msra.mxu0 %v827
      %886 = vmatpush.msra.mxu0 %v826
      %887 = vmatpush.msra.mxu0 %v825
      %888 = vmatpush.msra.mxu0 %v824
      %889 = vmatpush.msra.mxu0 %v823
      %890 = vmatpush.msra.mxu0 %v822
      %891 = vmatmul.f32.gmra.mxu0 %v759
      %v892 = vpop.f32.mrf.mxu0
      %v893 = vadd.f32 %v873, %v892
      %894 = vdwg.mxu0
      %v895 = vld [vmem:[%s14] sm:$0x1]
      %v897 = vperm.slane %v895, 0
      %v899 = vadd.f32 %v893, %v897
      %v900 = vld [vmem:[%s13] sm:$0xff]
      %v901 = vld [vmem:[%s13 + $0x8] sm:$0xff]
      %v902 = vld [vmem:[%s13 + $0x10] sm:$0xff]
      %v903 = vld [vmem:[%s13 + $0x18] sm:$0xff]
      %v904 = vld [vmem:[%s13 + $0x20] sm:$0xff]
      %v905 = vld [vmem:[%s13 + $0x28] sm:$0xff]
      %v906 = vld [vmem:[%s13 + $0x30] sm:$0xff]
      %v907 = vld [vmem:[%s13 + $0x38] sm:$0xff]
      %v908 = vld [vmem:[%s13 + $0x40] sm:$0xff]
      %v909 = vld [vmem:[%s13 + $0x48] sm:$0xff]
      %v910 = vld [vmem:[%s13 + $0x50] sm:$0xff]
      %v911 = vld [vmem:[%s13 + $0x58] sm:$0xff]
      %v912 = vld [vmem:[%s13 + $0x60] sm:$0xff]
      %v913 = vld [vmem:[%s13 + $0x68] sm:$0xff]
      %v914 = vld [vmem:[%s13 + $0x70] sm:$0xff]
      %v915 = vld [vmem:[%s13 + $0x78] sm:$0xff]
      %916 = vmatpush.msra.mxu0 %v837
      %917 = vmatpush.msra.mxu0 %v836
      %918 = vmatpush.msra.mxu0 %v835
      %919 = vmatpush.msra.mxu0 %v834
      %920 = vmatpush.msra.mxu0 %v833
      %921 = vmatpush.msra.mxu0 %v832
      %922 = vmatpush.msra.mxu0 %v831
      %923 = vmatpush.msra.mxu0 %v830
      %924 = vmatpush.msra.mxu0 %v829
      %925 = vmatpush.msra.mxu0 %v828
      %926 = vmatpush.msra.mxu0 %v827
      %927 = vmatpush.msra.mxu0 %v826
      %928 = vmatpush.msra.mxu0 %v825
      %929 = vmatpush.msra.mxu0 %v824
      %930 = vmatpush.msra.mxu0 %v823
      %931 = vmatpush.msra.mxu0 %v822
      %932 = vmatmul.f32.gmra.mxu0 %v789
      %v933 = vpop.f32.mrf.mxu0
      %v934 = vadd.f32 0.0, %v933
      %935 = vdwg.mxu0
      %936 = vmatpush.msra.mxu0 %v915
      %937 = vmatpush.msra.mxu0 %v914
      %938 = vmatpush.msra.mxu0 %v913
      %939 = vmatpush.msra.mxu0 %v912
      %940 = vmatpush.msra.mxu0 %v911
      %941 = vmatpush.msra.mxu0 %v910
      %942 = vmatpush.msra.mxu0 %v909
      %943 = vmatpush.msra.mxu0 %v908
      %944 = vmatpush.msra.mxu0 %v907
      %945 = vmatpush.msra.mxu0 %v906
      %946 = vmatpush.msra.mxu0 %v905
      %947 = vmatpush.msra.mxu0 %v904
      %948 = vmatpush.msra.mxu0 %v903
      %949 = vmatpush.msra.mxu0 %v902
      %950 = vmatpush.msra.mxu0 %v901
      %951 = vmatpush.msra.mxu0 %v900
      %952 = vmatmul.f32.gmra.mxu0 %v759
      %v953 = vpop.f32.mrf.mxu0
      %v954 = vadd.f32 %v934, %v953
      %955 = vdwg.mxu0
      %956 = vmatpush.msra.mxu0 %v854
      %957 = vmatpush.msra.mxu0 %v853
      %958 = vmatpush.msra.mxu0 %v852
      %959 = vmatpush.msra.mxu0 %v851
      %960 = vmatpush.msra.mxu0 %v850
      %961 = vmatpush.msra.mxu0 %v849
      %962 = vmatpush.msra.mxu0 %v848
      %963 = vmatpush.msra.mxu0 %v847
      %964 = vmatpush.msra.mxu0 %v846
      %965 = vmatpush.msra.mxu0 %v845
      %966 = vmatpush.msra.mxu0 %v844
      %967 = vmatpush.msra.mxu0 %v843
      %968 = vmatpush.msra.mxu0 %v842
      %969 = vmatpush.msra.mxu0 %v841
      %970 = vmatpush.msra.mxu0 %v840
      %971 = vmatpush.msra.mxu0 %v839
      %972 = vmatmul.f32.gmra.mxu0 %v818
      %v973 = vpop.f32.mrf.mxu0
      %v974 = vadd.f32 0.0, %v973
      %975 = vdwg.mxu0
      %v976 = vadd.f32 %v954, %v974
      %v977 = vadd.f32 %v976, %v897
      %978 = vmatpush.msra.mxu0 %v837
      %979 = vmatpush.msra.mxu0 %v836
      %980 = vmatpush.msra.mxu0 %v835
      %981 = vmatpush.msra.mxu0 %v834
      %982 = vmatpush.msra.mxu0 %v833
      %983 = vmatpush.msra.mxu0 %v832
      %984 = vmatpush.msra.mxu0 %v831
      %985 = vmatpush.msra.mxu0 %v830
      %986 = vmatpush.msra.mxu0 %v829
      %987 = vmatpush.msra.mxu0 %v828
      %988 = vmatpush.msra.mxu0 %v827
      %989 = vmatpush.msra.mxu0 %v826
      %990 = vmatpush.msra.mxu0 %v825
      %991 = vmatpush.msra.mxu0 %v824
      %992 = vmatpush.msra.mxu0 %v823
      %993 = vmatpush.msra.mxu0 %v822
      %994 = vmatmul.f32.gmra.mxu0 %v818
      %v995 = vpop.f32.mrf.mxu0
      %v996 = vadd.f32 0.0, %v995
      %997 = vdwg.mxu0
      %998 = vmatpush.msra.mxu0 %v915
      %999 = vmatpush.msra.mxu0 %v914
      %1000 = vmatpush.msra.mxu0 %v913
      %1001 = vmatpush.msra.mxu0 %v912
      %1002 = vmatpush.msra.mxu0 %v911
      %1003 = vmatpush.msra.mxu0 %v910
      %1004 = vmatpush.msra.mxu0 %v909
      %1005 = vmatpush.msra.mxu0 %v908
      %1006 = vmatpush.msra.mxu0 %v907
      %1007 = vmatpush.msra.mxu0 %v906
      %1008 = vmatpush.msra.mxu0 %v905
      %1009 = vmatpush.msra.mxu0 %v904
      %1010 = vmatpush.msra.mxu0 %v903
      %1011 = vmatpush.msra.mxu0 %v902
      %1012 = vmatpush.msra.mxu0 %v901
      %1013 = vmatpush.msra.mxu0 %v900
      %1014 = vmatmul.f32.gmra.mxu0 %v789
      %v1015 = vpop.f32.mrf.mxu0
      %v1016 = vadd.f32 %v996, %v1015
      %1017 = vdwg.mxu0
      %1018 = vmatpush.msra.mxu0 %v854
      %1019 = vmatpush.msra.mxu0 %v853
      %1020 = vmatpush.msra.mxu0 %v852
      %1021 = vmatpush.msra.mxu0 %v851
      %1022 = vmatpush.msra.mxu0 %v850
      %1023 = vmatpush.msra.mxu0 %v849
      %1024 = vmatpush.msra.mxu0 %v848
      %1025 = vmatpush.msra.mxu0 %v847
      %1026 = vmatpush.msra.mxu0 %v846
      %1027 = vmatpush.msra.mxu0 %v845
      %1028 = vmatpush.msra.mxu0 %v844
      %1029 = vmatpush.msra.mxu0 %v843
      %1030 = vmatpush.msra.mxu0 %v842
      %1031 = vmatpush.msra.mxu0 %v841
      %1032 = vmatpush.msra.mxu0 %v840
      %1033 = vmatpush.msra.mxu0 %v839
      %1034 = vmatmul.f32.gmra.mxu0 %v820
      %v1035 = vpop.f32.mrf.mxu0
      %v1036 = vadd.f32 0.0, %v1035
      %1037 = vdwg.mxu0
      %v1038 = vadd.f32 %v1016, %v1036
      %v1039 = vadd.f32 %v1038, %v897
      %1040 = vmatpush.msra.mxu0 %v837
      %1041 = vmatpush.msra.mxu0 %v836
      %1042 = vmatpush.msra.mxu0 %v835
      %1043 = vmatpush.msra.mxu0 %v834
      %1044 = vmatpush.msra.mxu0 %v833
      %1045 = vmatpush.msra.mxu0 %v832
      %1046 = vmatpush.msra.mxu0 %v831
      %1047 = vmatpush.msra.mxu0 %v830
      %1048 = vmatpush.msra.mxu0 %v829
      %1049 = vmatpush.msra.mxu0 %v828
      %1050 = vmatpush.msra.mxu0 %v827
      %1051 = vmatpush.msra.mxu0 %v826
      %1052 = vmatpush.msra.mxu0 %v825
      %1053 = vmatpush.msra.mxu0 %v824
      %1054 = vmatpush.msra.mxu0 %v823
      %1055 = vmatpush.msra.mxu0 %v822
      %1056 = vmatmul.f32.gmra.mxu0 %v820
      %v1057 = vpop.f32.mrf.mxu0
      %v1058 = vadd.f32 0.0, %v1057
      %1059 = vdwg.mxu0
      %1060 = vmatpush.msra.mxu0 %v915
      %1061 = vmatpush.msra.mxu0 %v914
      %1062 = vmatpush.msra.mxu0 %v913
      %1063 = vmatpush.msra.mxu0 %v912
      %1064 = vmatpush.msra.mxu0 %v911
      %1065 = vmatpush.msra.mxu0 %v910
      %1066 = vmatpush.msra.mxu0 %v909
      %1067 = vmatpush.msra.mxu0 %v908
      %1068 = vmatpush.msra.mxu0 %v907
      %1069 = vmatpush.msra.mxu0 %v906
      %1070 = vmatpush.msra.mxu0 %v905
      %1071 = vmatpush.msra.mxu0 %v904
      %1072 = vmatpush.msra.mxu0 %v903
      %1073 = vmatpush.msra.mxu0 %v902
      %1074 = vmatpush.msra.mxu0 %v901
      %1075 = vmatpush.msra.mxu0 %v900
      %1076 = vmatmul.f32.gmra.mxu0 %v818
      %v1077 = vpop.f32.mrf.mxu0
      %v1078 = vadd.f32 %v1058, %v1077
      %1079 = vdwg.mxu0
      %v1080 = vadd.f32 %v1078, %v897
      %1081 = vst.msk [vmem:[%s489] sm:$0xff] %vm698, %v899
      %1083 = vrot.lane.b32.xlu0 %v977, 16
      %v1084 = vpop.permute.xlu0 %1083
      %vm1086 = vcmask 261248
      %1087 = vst.msk [vmem:[%s489] sm:$0xff] %vm1086, %v1084
      %1089 = vrot.lane.b32.xlu0 %v1039, 32
      %v1090 = vpop.permute.xlu0 %1089
      %vm1092 = vcmask 392448
      %1093 = vst.msk [vmem:[%s489] sm:$0xff] %vm1092, %v1090
      %1095 = vrot.lane.b32.xlu0 %v1080, 48
      %v1096 = vpop.permute.xlu0 %1095
      %vm1098 = vcmask 523648
      %1099 = vst.msk [vmem:[%s489] sm:$0xff] %vm1098, %v1096
      %p1100 = scmp.lt.s32.totalorder %s26, 1
      %s1101 = scalar_select %p1100, %s26, 1
      %s1102 = smul.addr %s1101, 8
      %s1103 = scalar_lea.vmem %s15, %s1102
      // Predicated region
      $region81: #{conv_autoencoder_forward.1} parent=79 // pred_check
        %p1104 = pneg %p364
      $region82: #{conv_autoencoder_forward.1} parent=79 // pred_check_branch
        %1106 = sbr.rel (%p1104) target = $region84
      $region83: #{conv_autoencoder_forward.1} parent=79 // pred_region
        _
      $region84: #{conv_autoencoder_forward.1} parent=79 // pred_fallthru
        _
    $region80: #{conv_autoencoder_forward.1} parent=5 // pred_fallthru
      _
    %p1107 = scmp.le.s32.totalorder 2, %s21
    // Predicated region
    $region85: #{conv_autoencoder_forward.1} parent=5 // pred_check
      %p1108 = pneg %p1107
    $region86: #{conv_autoencoder_forward.1} parent=5 // pred_check_branch
      %1110 = sbr.rel (%p1108) target = $region88
    $region87: #{conv_autoencoder_forward.1} parent=5 // pred_region
      %s1111 = ssub.s32 %s21, 2
      // Predicated region
      $region89: #{conv_autoencoder_forward.1} parent=87 // pred_check
        %p1112 = pneg %p370
      $region90: #{conv_autoencoder_forward.1} parent=87 // pred_check_branch
        %1114 = sbr.rel (%p1112) target = $region92
      $region91: #{conv_autoencoder_forward.1} parent=87 // pred_region
        %p1115 = scmp.lt.s32.totalorder %s27, 1
        %s1116 = scalar_select %p1115, %s27, 1
        %s1117 = smul.addr %s1116, 8
        %s1118 = scalar_lea.vmem %s15, %s1117
      $region92: #{conv_autoencoder_forward.1} parent=87 // pred_fallthru
        _
    $region88: #{conv_autoencoder_forward.1} parent=5 // pred_fallthru
      _
  $region6: #{conv_autoencoder_forward.1} parent=0 // loop_footer
    %s25 = sadd.s32 1, %s21
  $region7: #{conv_autoencoder_forward.1} parent=0 // loop_footer_branch
    %20 = sbr.rel target = $region3
  $region8: #{conv_autoencoder_forward.1} parent=0 // loop_exit
    _

</llo_original>
